<compile_context>
chip_gen: v5e
topology: v5e:2x2
jax: 0.10.0
libtpu: 0.0.40
codegen_flags: <defaults>
</compile_context>

<pallas_src>
import functools

import jax
import jax.numpy as jnp
from jax.experimental import pallas as pl
from jax.experimental.pallas import tpu as pltpu


_DEFAULT_TARGET_BLOCK_BYTES = 2 * 1024 * 1024  # ~2 MiB per VMEM buffer


def _choose_tiles(B, C, T, itemsize, target_bytes):
    """Pick (samples_per_block, channel_tile) so one block stays ~target_bytes."""
    row_bytes = T * itemsize
    sample_bytes = C * row_bytes
    if sample_bytes <= target_bytes:
        # Whole sample(s) per block: pack as many samples as fit (exact divisor
        # of B so the grid needs no padding and SMEM shift reads stay in-bounds).
        ct = C
        bt = max(1, min(B, target_bytes // max(sample_bytes, 1)))
        while B % bt != 0:
            bt -= 1
    else:
        # One sample per block, tile the channel axis (no halo: shift is along T).
        bt = 1
        ct = max(8, (target_bytes // max(row_bytes, 1)) // 8 * 8)
        ct = min(ct, C)
    return int(bt), int(ct)


def _phase_shuffle_kernel(k_ref, x_ref, o_ref, *, shift_factor, bt):
    # k_ref: SMEM (B,) int32 per-sample shifts (scalar prefetch).
    # x_ref / o_ref: VMEM blocks of shape (bt, Ct, T), native dtype.
    T = x_ref.shape[-1]
    base = pl.program_id(0) * bt
    # Lane-index iota used to patch the <= shift_factor reflected boundary
    # columns with full-vreg selects (keeps the final store dense & unmasked).
    lane = jax.lax.broadcasted_iota(jnp.int32, x_ref.shape[1:], 1)  # (Ct, T)

    for r in range(bt):
        kb = k_ref[base + r]
        xr = x_ref[r]  # single (Ct, T) load, reused by every branch

        # Exactly one of the branches below fires per row (wrapper clips k),
        # so the full output row is always written exactly once.
        @pl.when(kb == 0)
        def _(r=r, xr=xr):
            o_ref[r] = xr

        for kk in range(1, shift_factor + 1):
            # Positive shift +kk: out[t] = x[t-kk] for t >= kk;
            # reflected left edge: out[t] = x[kk-t] for t < kk.
            @pl.when(kb == kk)
            def _(r=r, xr=xr, kk=kk):
                res = pltpu.roll(xr, shift=kk, axis=1)  # res[t] = x[(t-kk) % T]
                for t in range(kk):
                    col = xr[:, kk - t : kk - t + 1]      # (Ct, 1)
                    res = jnp.where(lane == t, col, res)
                o_ref[r] = res

            # Negative shift -kk: out[t] = x[t+kk] for t < T-kk;
            # reflected right edge: out[T-kk+u] = x[T-2-u] for u < kk.
            @pl.when(kb == -kk)
            def _(r=r, xr=xr, kk=kk):
                res = pltpu.roll(xr, shift=T - kk, axis=1)  # res[t] = x[(t+kk) % T]
                for u in range(kk):
                    col = xr[:, T - 2 - u : T - 1 - u]      # (Ct, 1)
                    res = jnp.where(lane == T - kk + u, col, res)
                o_ref[r] = res


def phase_shuffle_pallas(
    x, k, shift_factor, *, target_block_bytes=_DEFAULT_TARGET_BLOCK_BYTES
):
    """x: (B, C, T); k: (B,) int shifts in [-shift_factor, shift_factor]."""
    B, C, T = x.shape
    if shift_factor == 0:
        return x
    assert shift_factor <= T - 1, "shift_factor must be <= T-1 (reflect padding)"
    k = jnp.clip(k.astype(jnp.int32), -shift_factor, shift_factor)
    assert k.shape == (B,)

    itemsize = jnp.dtype(x.dtype).itemsize
    bt, ct = _choose_tiles(B, C, T, itemsize, target_block_bytes)
    grid = (B // bt, pl.cdiv(C, ct))
    block_bytes = bt * ct * T * itemsize
    # Room for double-buffered input + output with headroom; modest on v7x (64 MiB).
    vmem_limit = int(min(max(8 * block_bytes, 32 * 1024 * 1024), 100 * 1024 * 1024))

    kernel = functools.partial(_phase_shuffle_kernel, shift_factor=shift_factor, bt=bt)
    return pl.pallas_call(
        kernel,
        out_shape=jax.ShapeDtypeStruct((B, C, T), x.dtype),
        grid_spec=pltpu.PrefetchScalarGridSpec(
            num_scalar_prefetch=1,
            grid=grid,
            in_specs=[pl.BlockSpec((bt, ct, T), lambda b, c, k_ref: (b, c, 0))],
            out_specs=pl.BlockSpec((bt, ct, T), lambda b, c, k_ref: (b, c, 0)),
        ),
        compiler_params=pltpu.CompilerParams(
            dimension_semantics=("parallel", "parallel"),  # disjoint output blocks
            vmem_limit_bytes=vmem_limit,
        ),
    )(k, x)


class PhaseShuffle:
    """JAX/Pallas port of the PyTorch PhaseShuffle module."""

    def __init__(self, shift_factor, batch_shuffle=False):
        self.shift_factor = shift_factor
        self.batch_shuffle = batch_shuffle

    def __call__(self, x, key):
        if self.shift_factor == 0:
            return x
        B, C, T = x.shape
        s = self.shift_factor
        if self.batch_shuffle:
            k = jax.random.randint(key, (1,), 0, 2 * s + 1) - s
            # Single shift for the whole batch: flatten (B, C) into one row axis
            # and stream it as pipelined row tiles (same kernel, Ct-tiling).
            out = phase_shuffle_pallas(x.reshape(1, B * C, T), k, s)
            return out.reshape(B, C, T)
        k = jax.random.randint(key, (B,), 0, 2 * s + 1) - s
        return phase_shuffle_pallas(x, k, s)


def _reference_phase_shuffle(x, k):
    """Pure-JAX reference: out[b, c, t] = x[b, c, reflect(t - k[b])]."""
    T = x.shape[-1]

    def one(xb, kb):
        s = jnp.arange(T) - kb
        s = jnp.where(s < 0, -s, s)
        s = jnp.where(s > T - 1, 2 * (T - 1) - s, s)
        return xb[:, s]

    return jax.vmap(one)(x, k)


if __name__ == "__main__":
    key = jax.random.PRNGKey(0)
    kx, kx2, krand = jax.random.split(key, 3)

    # Case 1: packed-samples path (bt > 1); explicit shifts cover every case.
    B, C, T = 5, 4, 16
    shift_factor = 2
    x = jax.random.normal(kx, (B, C, T), dtype=jnp.float32)
    k = jnp.array([-2, -1, 0, 1, 2], dtype=jnp.int32)
    out = jax.block_until_ready(phase_shuffle_pallas(x, k, shift_factor))
    assert out.shape == x.shape
    assert bool(jnp.array_equal(out, _reference_phase_shuffle(x, k))), "case 1"

    # Case 2: force one-sample-per-block path (bt == 1, grid over B).
    out2 = jax.block_until_ready(
        phase_shuffle_pallas(x, k, shift_factor, target_block_bytes=300)
    )
    assert bool(jnp.array_equal(out2, _reference_phase_shuffle(x, k))), "case 2"

    # Case 3: channel-tiled path (Ct < C), lane-dense T = 128.
    B3, C3, T3 = 2, 16, 128
    x3 = jax.random.normal(kx2, (B3, C3, T3), dtype=jnp.float32)
    k3 = jnp.array([2, -1], dtype=jnp.int32)
    out3 = jax.block_until_ready(
        phase_shuffle_pallas(x3, k3, shift_factor, target_block_bytes=4096)
    )
    assert bool(jnp.array_equal(out3, _reference_phase_shuffle(x3, k3))), "case 3"

    # Case 4: module path, per-sample random shifts (reconstruct k to verify).
    module = PhaseShuffle(shift_factor, batch_shuffle=False)
    out_mod = jax.block_until_ready(module(x, krand))
    k_mod = jax.random.randint(krand, (B,), 0, 2 * shift_factor + 1) - shift_factor
    assert bool(jnp.array_equal(out_mod, _reference_phase_shuffle(x, k_mod))), "case 4"

    # Case 5: module path, batch_shuffle=True (single shift, row-tiled stream).
    module_b = PhaseShuffle(shift_factor, batch_shuffle=True)
    out_b = jax.block_until_ready(module_b(x, krand))
    k_b = jax.random.randint(krand, (1,), 0, 2 * shift_factor + 1) - shift_factor
    ref_b = _reference_phase_shuffle(x, jnp.broadcast_to(k_b, (B,)))
    assert bool(jnp.array_equal(out_b, ref_b)), "case 5"

    print("KERNEL_OK")
</pallas_src>

<mosaic_0001>
module attributes {stable_mosaic.version = 11 : i64} {
  func.func @_phase_shuffle_kernel(%arg0: i32, %arg1: i32, %arg2: memref<5xi32, #tpu.memory_space<smem>>, %arg3: memref<5x4x16xf32, #tpu.memory_space<vmem>>, %arg4: memref<5x4x16xf32, #tpu.memory_space<vmem>>) attributes {dimension_semantics = [#tpu.dimension_semantics<parallel>, #tpu.dimension_semantics<parallel>], iteration_bounds = array<i64: 1, 1>, scalar_prefetch = 1 : i64, scratch_operands = 0 : i64, tpu.core_type = #tpu.core_type<tc>, window_params = [{transform_indices = @transform_0, window_bounds = array<i64: 5, 4, 16>}, {transform_indices = @transform_1, window_bounds = array<i64: 5, 4, 16>}]} {
    %c5_i32 = arith.constant 5 : i32
    %0 = arith.muli %arg0, %c5_i32 : i32
    %1 = tpu.iota {dimensions = array<i32: 1>} : vector<4x16xi32>
    %c0_i32 = arith.constant 0 : i32
    %2 = arith.addi %0, %c0_i32 : i32
    %3 = arith.index_cast %2 : i32 to index
    %4 = memref.load %arg2[%3] : memref<5xi32, #tpu.memory_space<smem>>
    %c0 = arith.constant 0 : index
    %c0_0 = arith.constant 0 : index
    %c0_1 = arith.constant 0 : index
    %5 = vector.load %arg3[%c0, %c0_0, %c0_1] : memref<5x4x16xf32, #tpu.memory_space<vmem>>, vector<1x4x16xf32>
    %6 = vector.shape_cast %5 : vector<1x4x16xf32> to vector<4x16xf32>
    %c0_i32_2 = arith.constant 0 : i32
    %7 = arith.cmpi eq, %4, %c0_i32_2 : i32
    %8 = arith.extui %7 : i1 to i32
    %c0_i32_3 = arith.constant 0 : i32
    %9 = arith.cmpi ne, %8, %c0_i32_3 : i32
    scf.if %9 {
      %c0_58 = arith.constant 0 : index
      %c0_59 = arith.constant 0 : index
      %c0_60 = arith.constant 0 : index
      %102 = vector.load %arg4[%c0_58, %c0_59, %c0_60] : memref<5x4x16xf32, #tpu.memory_space<vmem>>, vector<1x4x16xf32>
      %103 = vector.shape_cast %102 : vector<1x4x16xf32> to vector<4x16xf32>
      %104 = vector.shape_cast %6 : vector<4x16xf32> to vector<1x4x16xf32>
      tpu.vector_store %arg4[%c0_58, %c0_59, %c0_60], %104 {strides = array<i32>} : memref<5x4x16xf32, #tpu.memory_space<vmem>>, vector<1x4x16xf32>,
    } else {
    }
    %c1_i32 = arith.constant 1 : i32
    %10 = arith.cmpi eq, %4, %c1_i32 : i32
    %11 = arith.extui %10 : i1 to i32
    %c0_i32_4 = arith.constant 0 : i32
    %12 = arith.cmpi ne, %11, %c0_i32_4 : i32
    scf.if %12 {
      %c1_i32_58 = arith.constant 1 : i32
      %102 = tpu.dynamic_rotate %6 by %c1_i32_58 dim 1 : vector<4x16xf32>, i32 -> vector<4x16xf32>
      %103 = vector.extract_strided_slice %6 {offsets = [0, 1], sizes = [4, 1], strides = [1, 1]} : vector<4x16xf32> to vector<4x1xf32>
      %c0_i32_59 = arith.constant 0 : i32
      %104 = vector.broadcast %c0_i32_59 : i32 to vector<4x16xi32>
      %105 = arith.cmpi eq, %1, %104 : vector<4x16xi32>
      %106 = vector.shape_cast %103 : vector<4x1xf32> to vector<4x1xf32>
      %107 = vector.broadcast %106 : vector<4x1xf32> to vector<4x16xf32>
      %108 = arith.select %105, %107, %102 : vector<4x16xi1>, vector<4x16xf32>
      %c0_60 = arith.constant 0 : index
      %c0_61 = arith.constant 0 : index
      %c0_62 = arith.constant 0 : index
      %109 = vector.load %arg4[%c0_60, %c0_61, %c0_62] : memref<5x4x16xf32, #tpu.memory_space<vmem>>, vector<1x4x16xf32>
      %110 = vector.shape_cast %109 : vector<1x4x16xf32> to vector<4x16xf32>
      %111 = vector.shape_cast %108 : vector<4x16xf32> to vector<1x4x16xf32>
      tpu.vector_store %arg4[%c0_60, %c0_61, %c0_62], %111 {strides = array<i32>} : memref<5x4x16xf32, #tpu.memory_space<vmem>>, vector<1x4x16xf32>,
    } else {
    }
    %c-1_i32 = arith.constant -1 : i32
    %13 = arith.cmpi eq, %4, %c-1_i32 : i32
    %14 = arith.extui %13 : i1 to i32
    %c0_i32_5 = arith.constant 0 : i32
    %15 = arith.cmpi ne, %14, %c0_i32_5 : i32
    scf.if %15 {
      %c15_i32 = arith.constant 15 : i32
      %102 = tpu.dynamic_rotate %6 by %c15_i32 dim 1 : vector<4x16xf32>, i32 -> vector<4x16xf32>
      %103 = vector.extract_strided_slice %6 {offsets = [0, 14], sizes = [4, 1], strides = [1, 1]} : vector<4x16xf32> to vector<4x1xf32>
      %c15_i32_58 = arith.constant 15 : i32
      %104 = vector.broadcast %c15_i32_58 : i32 to vector<4x16xi32>
      %105 = arith.cmpi eq, %1, %104 : vector<4x16xi32>
      %106 = vector.shape_cast %103 : vector<4x1xf32> to vector<4x1xf32>
      %107 = vector.broadcast %106 : vector<4x1xf32> to vector<4x16xf32>
      %108 = arith.select %105, %107, %102 : vector<4x16xi1>, vector<4x16xf32>
      %c0_59 = arith.constant 0 : index
      %c0_60 = arith.constant 0 : index
      %c0_61 = arith.constant 0 : index
      %109 = vector.load %arg4[%c0_59, %c0_60, %c0_61] : memref<5x4x16xf32, #tpu.memory_space<vmem>>, vector<1x4x16xf32>
      %110 = vector.shape_cast %109 : vector<1x4x16xf32> to vector<4x16xf32>
      %111 = vector.shape_cast %108 : vector<4x16xf32> to vector<1x4x16xf32>
      tpu.vector_store %arg4[%c0_59, %c0_60, %c0_61], %111 {strides = array<i32>} : memref<5x4x16xf32, #tpu.memory_space<vmem>>, vector<1x4x16xf32>,
    } else {
    }
    %c2_i32 = arith.constant 2 : i32
    %16 = arith.cmpi eq, %4, %c2_i32 : i32
    %17 = arith.extui %16 : i1 to i32
    %c0_i32_6 = arith.constant 0 : i32
    %18 = arith.cmpi ne, %17, %c0_i32_6 : i32
    scf.if %18 {
      %c2_i32_58 = arith.constant 2 : i32
      %102 = tpu.dynamic_rotate %6 by %c2_i32_58 dim 1 : vector<4x16xf32>, i32 -> vector<4x16xf32>
      %103 = vector.extract_strided_slice %6 {offsets = [0, 2], sizes = [4, 1], strides = [1, 1]} : vector<4x16xf32> to vector<4x1xf32>
      %c0_i32_59 = arith.constant 0 : i32
      %104 = vector.broadcast %c0_i32_59 : i32 to vector<4x16xi32>
      %105 = arith.cmpi eq, %1, %104 : vector<4x16xi32>
      %106 = vector.shape_cast %103 : vector<4x1xf32> to vector<4x1xf32>
      %107 = vector.broadcast %106 : vector<4x1xf32> to vector<4x16xf32>
      %108 = arith.select %105, %107, %102 : vector<4x16xi1>, vector<4x16xf32>
      %109 = vector.extract_strided_slice %6 {offsets = [0, 1], sizes = [4, 1], strides = [1, 1]} : vector<4x16xf32> to vector<4x1xf32>
      %c1_i32_60 = arith.constant 1 : i32
      %110 = vector.broadcast %c1_i32_60 : i32 to vector<4x16xi32>
      %111 = arith.cmpi eq, %1, %110 : vector<4x16xi32>
      %112 = vector.shape_cast %109 : vector<4x1xf32> to vector<4x1xf32>
      %113 = vector.broadcast %112 : vector<4x1xf32> to vector<4x16xf32>
      %114 = arith.select %111, %113, %108 : vector<4x16xi1>, vector<4x16xf32>
      %c0_61 = arith.constant 0 : index
      %c0_62 = arith.constant 0 : index
      %c0_63 = arith.constant 0 : index
      %115 = vector.load %arg4[%c0_61, %c0_62, %c0_63] : memref<5x4x16xf32, #tpu.memory_space<vmem>>, vector<1x4x16xf32>
      %116 = vector.shape_cast %115 : vector<1x4x16xf32> to vector<4x16xf32>
      %117 = vector.shape_cast %114 : vector<4x16xf32> to vector<1x4x16xf32>
      tpu.vector_store %arg4[%c0_61, %c0_62, %c0_63], %117 {strides = array<i32>} : memref<5x4x16xf32, #tpu.memory_space<vmem>>, vector<1x4x16xf32>,
    } else {
    }
    %c-2_i32 = arith.constant -2 : i32
    %19 = arith.cmpi eq, %4, %c-2_i32 : i32
    %20 = arith.extui %19 : i1 to i32
    %c0_i32_7 = arith.constant 0 : i32
    %21 = arith.cmpi ne, %20, %c0_i32_7 : i32
    scf.if %21 {
      %c14_i32 = arith.constant 14 : i32
      %102 = tpu.dynamic_rotate %6 by %c14_i32 dim 1 : vector<4x16xf32>, i32 -> vector<4x16xf32>
      %103 = vector.extract_strided_slice %6 {offsets = [0, 14], sizes = [4, 1], strides = [1, 1]} : vector<4x16xf32> to vector<4x1xf32>
      %c14_i32_58 = arith.constant 14 : i32
      %104 = vector.broadcast %c14_i32_58 : i32 to vector<4x16xi32>
      %105 = arith.cmpi eq, %1, %104 : vector<4x16xi32>
      %106 = vector.shape_cast %103 : vector<4x1xf32> to vector<4x1xf32>
      %107 = vector.broadcast %106 : vector<4x1xf32> to vector<4x16xf32>
      %108 = arith.select %105, %107, %102 : vector<4x16xi1>, vector<4x16xf32>
      %109 = vector.extract_strided_slice %6 {offsets = [0, 13], sizes = [4, 1], strides = [1, 1]} : vector<4x16xf32> to vector<4x1xf32>
      %c15_i32 = arith.constant 15 : i32
      %110 = vector.broadcast %c15_i32 : i32 to vector<4x16xi32>
      %111 = arith.cmpi eq, %1, %110 : vector<4x16xi32>
      %112 = vector.shape_cast %109 : vector<4x1xf32> to vector<4x1xf32>
      %113 = vector.broadcast %112 : vector<4x1xf32> to vector<4x16xf32>
      %114 = arith.select %111, %113, %108 : vector<4x16xi1>, vector<4x16xf32>
      %c0_59 = arith.constant 0 : index
      %c0_60 = arith.constant 0 : index
      %c0_61 = arith.constant 0 : index
      %115 = vector.load %arg4[%c0_59, %c0_60, %c0_61] : memref<5x4x16xf32, #tpu.memory_space<vmem>>, vector<1x4x16xf32>
      %116 = vector.shape_cast %115 : vector<1x4x16xf32> to vector<4x16xf32>
      %117 = vector.shape_cast %114 : vector<4x16xf32> to vector<1x4x16xf32>
      tpu.vector_store %arg4[%c0_59, %c0_60, %c0_61], %117 {strides = array<i32>} : memref<5x4x16xf32, #tpu.memory_space<vmem>>, vector<1x4x16xf32>,
    } else {
    }
    %c1_i32_8 = arith.constant 1 : i32
    %22 = arith.addi %0, %c1_i32_8 : i32
    %23 = arith.index_cast %22 : i32 to index
    %24 = memref.load %arg2[%23] : memref<5xi32, #tpu.memory_space<smem>>
    %c1 = arith.constant 1 : index
    %c0_9 = arith.constant 0 : index
    %c0_10 = arith.constant 0 : index
    %25 = vector.load %arg3[%c1, %c0_9, %c0_10] : memref<5x4x16xf32, #tpu.memory_space<vmem>>, vector<1x4x16xf32>
    %26 = vector.shape_cast %25 : vector<1x4x16xf32> to vector<4x16xf32>
    %c0_i32_11 = arith.constant 0 : i32
    %27 = arith.cmpi eq, %24, %c0_i32_11 : i32
    %28 = arith.extui %27 : i1 to i32
    %c0_i32_12 = arith.constant 0 : i32
    %29 = arith.cmpi ne, %28, %c0_i32_12 : i32
    scf.if %29 {
      %c1_58 = arith.constant 1 : index
      %c0_59 = arith.constant 0 : index
      %c0_60 = arith.constant 0 : index
      %102 = vector.load %arg4[%c1_58, %c0_59, %c0_60] : memref<5x4x16xf32, #tpu.memory_space<vmem>>, vector<1x4x16xf32>
      %103 = vector.shape_cast %102 : vector<1x4x16xf32> to vector<4x16xf32>
      %104 = vector.shape_cast %26 : vector<4x16xf32> to vector<1x4x16xf32>
      tpu.vector_store %arg4[%c1_58, %c0_59, %c0_60], %104 {strides = array<i32>} : memref<5x4x16xf32, #tpu.memory_space<vmem>>, vector<1x4x16xf32>,
    } else {
    }
    %c1_i32_13 = arith.constant 1 : i32
    %30 = arith.cmpi eq, %24, %c1_i32_13 : i32
    %31 = arith.extui %30 : i1 to i32
    %c0_i32_14 = arith.constant 0 : i32
    %32 = arith.cmpi ne, %31, %c0_i32_14 : i32
    scf.if %32 {
      %c1_i32_58 = arith.constant 1 : i32
      %102 = tpu.dynamic_rotate %26 by %c1_i32_58 dim 1 : vector<4x16xf32>, i32 -> vector<4x16xf32>
      %103 = vector.extract_strided_slice %26 {offsets = [0, 1], sizes = [4, 1], strides = [1, 1]} : vector<4x16xf32> to vector<4x1xf32>
      %c0_i32_59 = arith.constant 0 : i32
      %104 = vector.broadcast %c0_i32_59 : i32 to vector<4x16xi32>
      %105 = arith.cmpi eq, %1, %104 : vector<4x16xi32>
      %106 = vector.shape_cast %103 : vector<4x1xf32> to vector<4x1xf32>
      %107 = vector.broadcast %106 : vector<4x1xf32> to vector<4x16xf32>
      %108 = arith.select %105, %107, %102 : vector<4x16xi1>, vector<4x16xf32>
      %c1_60 = arith.constant 1 : index
      %c0_61 = arith.constant 0 : index
      %c0_62 = arith.constant 0 : index
      %109 = vector.load %arg4[%c1_60, %c0_61, %c0_62] : memref<5x4x16xf32, #tpu.memory_space<vmem>>, vector<1x4x16xf32>
      %110 = vector.shape_cast %109 : vector<1x4x16xf32> to vector<4x16xf32>
      %111 = vector.shape_cast %108 : vector<4x16xf32> to vector<1x4x16xf32>
      tpu.vector_store %arg4[%c1_60, %c0_61, %c0_62], %111 {strides = array<i32>} : memref<5x4x16xf32, #tpu.memory_space<vmem>>, vector<1x4x16xf32>,
    } else {
    }
    %c-1_i32_15 = arith.constant -1 : i32
    %33 = arith.cmpi eq, %24, %c-1_i32_15 : i32
    %34 = arith.extui %33 : i1 to i32
    %c0_i32_16 = arith.constant 0 : i32
    %35 = arith.cmpi ne, %34, %c0_i32_16 : i32
    scf.if %35 {
      %c15_i32 = arith.constant 15 : i32
      %102 = tpu.dynamic_rotate %26 by %c15_i32 dim 1 : vector<4x16xf32>, i32 -> vector<4x16xf32>
      %103 = vector.extract_strided_slice %26 {offsets = [0, 14], sizes = [4, 1], strides = [1, 1]} : vector<4x16xf32> to vector<4x1xf32>
      %c15_i32_58 = arith.constant 15 : i32
      %104 = vector.broadcast %c15_i32_58 : i32 to vector<4x16xi32>
      %105 = arith.cmpi eq, %1, %104 : vector<4x16xi32>
      %106 = vector.shape_cast %103 : vector<4x1xf32> to vector<4x1xf32>
      %107 = vector.broadcast %106 : vector<4x1xf32> to vector<4x16xf32>
      %108 = arith.select %105, %107, %102 : vector<4x16xi1>, vector<4x16xf32>
      %c1_59 = arith.constant 1 : index
      %c0_60 = arith.constant 0 : index
      %c0_61 = arith.constant 0 : index
      %109 = vector.load %arg4[%c1_59, %c0_60, %c0_61] : memref<5x4x16xf32, #tpu.memory_space<vmem>>, vector<1x4x16xf32>
      %110 = vector.shape_cast %109 : vector<1x4x16xf32> to vector<4x16xf32>
      %111 = vector.shape_cast %108 : vector<4x16xf32> to vector<1x4x16xf32>
      tpu.vector_store %arg4[%c1_59, %c0_60, %c0_61], %111 {strides = array<i32>} : memref<5x4x16xf32, #tpu.memory_space<vmem>>, vector<1x4x16xf32>,
    } else {
    }
    %c2_i32_17 = arith.constant 2 : i32
    %36 = arith.cmpi eq, %24, %c2_i32_17 : i32
    %37 = arith.extui %36 : i1 to i32
    %c0_i32_18 = arith.constant 0 : i32
    %38 = arith.cmpi ne, %37, %c0_i32_18 : i32
    scf.if %38 {
      %c2_i32_58 = arith.constant 2 : i32
      %102 = tpu.dynamic_rotate %26 by %c2_i32_58 dim 1 : vector<4x16xf32>, i32 -> vector<4x16xf32>
      %103 = vector.extract_strided_slice %26 {offsets = [0, 2], sizes = [4, 1], strides = [1, 1]} : vector<4x16xf32> to vector<4x1xf32>
      %c0_i32_59 = arith.constant 0 : i32
      %104 = vector.broadcast %c0_i32_59 : i32 to vector<4x16xi32>
      %105 = arith.cmpi eq, %1, %104 : vector<4x16xi32>
      %106 = vector.shape_cast %103 : vector<4x1xf32> to vector<4x1xf32>
      %107 = vector.broadcast %106 : vector<4x1xf32> to vector<4x16xf32>
      %108 = arith.select %105, %107, %102 : vector<4x16xi1>, vector<4x16xf32>
      %109 = vector.extract_strided_slice %26 {offsets = [0, 1], sizes = [4, 1], strides = [1, 1]} : vector<4x16xf32> to vector<4x1xf32>
      %c1_i32_60 = arith.constant 1 : i32
      %110 = vector.broadcast %c1_i32_60 : i32 to vector<4x16xi32>
      %111 = arith.cmpi eq, %1, %110 : vector<4x16xi32>
      %112 = vector.shape_cast %109 : vector<4x1xf32> to vector<4x1xf32>
      %113 = vector.broadcast %112 : vector<4x1xf32> to vector<4x16xf32>
      %114 = arith.select %111, %113, %108 : vector<4x16xi1>, vector<4x16xf32>
      %c1_61 = arith.constant 1 : index
      %c0_62 = arith.constant 0 : index
      %c0_63 = arith.constant 0 : index
      %115 = vector.load %arg4[%c1_61, %c0_62, %c0_63] : memref<5x4x16xf32, #tpu.memory_space<vmem>>, vector<1x4x16xf32>
      %116 = vector.shape_cast %115 : vector<1x4x16xf32> to vector<4x16xf32>
      %117 = vector.shape_cast %114 : vector<4x16xf32> to vector<1x4x16xf32>
      tpu.vector_store %arg4[%c1_61, %c0_62, %c0_63], %117 {strides = array<i32>} : memref<5x4x16xf32, #tpu.memory_space<vmem>>, vector<1x4x16xf32>,
    } else {
    }
    %c-2_i32_19 = arith.constant -2 : i32
    %39 = arith.cmpi eq, %24, %c-2_i32_19 : i32
    %40 = arith.extui %39 : i1 to i32
    %c0_i32_20 = arith.constant 0 : i32
    %41 = arith.cmpi ne, %40, %c0_i32_20 : i32
    scf.if %41 {
      %c14_i32 = arith.constant 14 : i32
      %102 = tpu.dynamic_rotate %26 by %c14_i32 dim 1 : vector<4x16xf32>, i32 -> vector<4x16xf32>
      %103 = vector.extract_strided_slice %26 {offsets = [0, 14], sizes = [4, 1], strides = [1, 1]} : vector<4x16xf32> to vector<4x1xf32>
      %c14_i32_58 = arith.constant 14 : i32
      %104 = vector.broadcast %c14_i32_58 : i32 to vector<4x16xi32>
      %105 = arith.cmpi eq, %1, %104 : vector<4x16xi32>
      %106 = vector.shape_cast %103 : vector<4x1xf32> to vector<4x1xf32>
      %107 = vector.broadcast %106 : vector<4x1xf32> to vector<4x16xf32>
      %108 = arith.select %105, %107, %102 : vector<4x16xi1>, vector<4x16xf32>
      %109 = vector.extract_strided_slice %26 {offsets = [0, 13], sizes = [4, 1], strides = [1, 1]} : vector<4x16xf32> to vector<4x1xf32>
      %c15_i32 = arith.constant 15 : i32
      %110 = vector.broadcast %c15_i32 : i32 to vector<4x16xi32>
      %111 = arith.cmpi eq, %1, %110 : vector<4x16xi32>
      %112 = vector.shape_cast %109 : vector<4x1xf32> to vector<4x1xf32>
      %113 = vector.broadcast %112 : vector<4x1xf32> to vector<4x16xf32>
      %114 = arith.select %111, %113, %108 : vector<4x16xi1>, vector<4x16xf32>
      %c1_59 = arith.constant 1 : index
      %c0_60 = arith.constant 0 : index
      %c0_61 = arith.constant 0 : index
      %115 = vector.load %arg4[%c1_59, %c0_60, %c0_61] : memref<5x4x16xf32, #tpu.memory_space<vmem>>, vector<1x4x16xf32>
      %116 = vector.shape_cast %115 : vector<1x4x16xf32> to vector<4x16xf32>
      %117 = vector.shape_cast %114 : vector<4x16xf32> to vector<1x4x16xf32>
      tpu.vector_store %arg4[%c1_59, %c0_60, %c0_61], %117 {strides = array<i32>} : memref<5x4x16xf32, #tpu.memory_space<vmem>>, vector<1x4x16xf32>,
    } else {
    }
    %c2_i32_21 = arith.constant 2 : i32
    %42 = arith.addi %0, %c2_i32_21 : i32
    %43 = arith.index_cast %42 : i32 to index
    %44 = memref.load %arg2[%43] : memref<5xi32, #tpu.memory_space<smem>>
    %c2 = arith.constant 2 : index
    %c0_22 = arith.constant 0 : index
    %c0_23 = arith.constant 0 : index
    %45 = vector.load %arg3[%c2, %c0_22, %c0_23] : memref<5x4x16xf32, #tpu.memory_space<vmem>>, vector<1x4x16xf32>
    %46 = vector.shape_cast %45 : vector<1x4x16xf32> to vector<4x16xf32>
    %c0_i32_24 = arith.constant 0 : i32
    %47 = arith.cmpi eq, %44, %c0_i32_24 : i32
    %48 = arith.extui %47 : i1 to i32
    %c0_i32_25 = arith.constant 0 : i32
    %49 = arith.cmpi ne, %48, %c0_i32_25 : i32
    scf.if %49 {
      %c2_58 = arith.constant 2 : index
      %c0_59 = arith.constant 0 : index
      %c0_60 = arith.constant 0 : index
      %102 = vector.load %arg4[%c2_58, %c0_59, %c0_60] : memref<5x4x16xf32, #tpu.memory_space<vmem>>, vector<1x4x16xf32>
      %103 = vector.shape_cast %102 : vector<1x4x16xf32> to vector<4x16xf32>
      %104 = vector.shape_cast %46 : vector<4x16xf32> to vector<1x4x16xf32>
      tpu.vector_store %arg4[%c2_58, %c0_59, %c0_60], %104 {strides = array<i32>} : memref<5x4x16xf32, #tpu.memory_space<vmem>>, vector<1x4x16xf32>,
    } else {
    }
    %c1_i32_26 = arith.constant 1 : i32
    %50 = arith.cmpi eq, %44, %c1_i32_26 : i32
    %51 = arith.extui %50 : i1 to i32
    %c0_i32_27 = arith.constant 0 : i32
    %52 = arith.cmpi ne, %51, %c0_i32_27 : i32
    scf.if %52 {
      %c1_i32_58 = arith.constant 1 : i32
      %102 = tpu.dynamic_rotate %46 by %c1_i32_58 dim 1 : vector<4x16xf32>, i32 -> vector<4x16xf32>
      %103 = vector.extract_strided_slice %46 {offsets = [0, 1], sizes = [4, 1], strides = [1, 1]} : vector<4x16xf32> to vector<4x1xf32>
      %c0_i32_59 = arith.constant 0 : i32
      %104 = vector.broadcast %c0_i32_59 : i32 to vector<4x16xi32>
      %105 = arith.cmpi eq, %1, %104 : vector<4x16xi32>
      %106 = vector.shape_cast %103 : vector<4x1xf32> to vector<4x1xf32>
      %107 = vector.broadcast %106 : vector<4x1xf32> to vector<4x16xf32>
      %108 = arith.select %105, %107, %102 : vector<4x16xi1>, vector<4x16xf32>
      %c2_60 = arith.constant 2 : index
      %c0_61 = arith.constant 0 : index
      %c0_62 = arith.constant 0 : index
      %109 = vector.load %arg4[%c2_60, %c0_61, %c0_62] : memref<5x4x16xf32, #tpu.memory_space<vmem>>, vector<1x4x16xf32>
      %110 = vector.shape_cast %109 : vector<1x4x16xf32> to vector<4x16xf32>
      %111 = vector.shape_cast %108 : vector<4x16xf32> to vector<1x4x16xf32>
      tpu.vector_store %arg4[%c2_60, %c0_61, %c0_62], %111 {strides = array<i32>} : memref<5x4x16xf32, #tpu.memory_space<vmem>>, vector<1x4x16xf32>,
    } else {
    }
    %c-1_i32_28 = arith.constant -1 : i32
    %53 = arith.cmpi eq, %44, %c-1_i32_28 : i32
    %54 = arith.extui %53 : i1 to i32
    %c0_i32_29 = arith.constant 0 : i32
    %55 = arith.cmpi ne, %54, %c0_i32_29 : i32
    scf.if %55 {
      %c15_i32 = arith.constant 15 : i32
      %102 = tpu.dynamic_rotate %46 by %c15_i32 dim 1 : vector<4x16xf32>, i32 -> vector<4x16xf32>
      %103 = vector.extract_strided_slice %46 {offsets = [0, 14], sizes = [4, 1], strides = [1, 1]} : vector<4x16xf32> to vector<4x1xf32>
      %c15_i32_58 = arith.constant 15 : i32
      %104 = vector.broadcast %c15_i32_58 : i32 to vector<4x16xi32>
      %105 = arith.cmpi eq, %1, %104 : vector<4x16xi32>
      %106 = vector.shape_cast %103 : vector<4x1xf32> to vector<4x1xf32>
      %107 = vector.broadcast %106 : vector<4x1xf32> to vector<4x16xf32>
      %108 = arith.select %105, %107, %102 : vector<4x16xi1>, vector<4x16xf32>
      %c2_59 = arith.constant 2 : index
      %c0_60 = arith.constant 0 : index
      %c0_61 = arith.constant 0 : index
      %109 = vector.load %arg4[%c2_59, %c0_60, %c0_61] : memref<5x4x16xf32, #tpu.memory_space<vmem>>, vector<1x4x16xf32>
      %110 = vector.shape_cast %109 : vector<1x4x16xf32> to vector<4x16xf32>
      %111 = vector.shape_cast %108 : vector<4x16xf32> to vector<1x4x16xf32>
      tpu.vector_store %arg4[%c2_59, %c0_60, %c0_61], %111 {strides = array<i32>} : memref<5x4x16xf32, #tpu.memory_space<vmem>>, vector<1x4x16xf32>,
    } else {
    }
    %c2_i32_30 = arith.constant 2 : i32
    %56 = arith.cmpi eq, %44, %c2_i32_30 : i32
    %57 = arith.extui %56 : i1 to i32
    %c0_i32_31 = arith.constant 0 : i32
    %58 = arith.cmpi ne, %57, %c0_i32_31 : i32
    scf.if %58 {
      %c2_i32_58 = arith.constant 2 : i32
      %102 = tpu.dynamic_rotate %46 by %c2_i32_58 dim 1 : vector<4x16xf32>, i32 -> vector<4x16xf32>
      %103 = vector.extract_strided_slice %46 {offsets = [0, 2], sizes = [4, 1], strides = [1, 1]} : vector<4x16xf32> to vector<4x1xf32>
      %c0_i32_59 = arith.constant 0 : i32
      %104 = vector.broadcast %c0_i32_59 : i32 to vector<4x16xi32>
      %105 = arith.cmpi eq, %1, %104 : vector<4x16xi32>
      %106 = vector.shape_cast %103 : vector<4x1xf32> to vector<4x1xf32>
      %107 = vector.broadcast %106 : vector<4x1xf32> to vector<4x16xf32>
      %108 = arith.select %105, %107, %102 : vector<4x16xi1>, vector<4x16xf32>
      %109 = vector.extract_strided_slice %46 {offsets = [0, 1], sizes = [4, 1], strides = [1, 1]} : vector<4x16xf32> to vector<4x1xf32>
      %c1_i32_60 = arith.constant 1 : i32
      %110 = vector.broadcast %c1_i32_60 : i32 to vector<4x16xi32>
      %111 = arith.cmpi eq, %1, %110 : vector<4x16xi32>
      %112 = vector.shape_cast %109 : vector<4x1xf32> to vector<4x1xf32>
      %113 = vector.broadcast %112 : vector<4x1xf32> to vector<4x16xf32>
      %114 = arith.select %111, %113, %108 : vector<4x16xi1>, vector<4x16xf32>
      %c2_61 = arith.constant 2 : index
      %c0_62 = arith.constant 0 : index
      %c0_63 = arith.constant 0 : index
      %115 = vector.load %arg4[%c2_61, %c0_62, %c0_63] : memref<5x4x16xf32, #tpu.memory_space<vmem>>, vector<1x4x16xf32>
      %116 = vector.shape_cast %115 : vector<1x4x16xf32> to vector<4x16xf32>
      %117 = vector.shape_cast %114 : vector<4x16xf32> to vector<1x4x16xf32>
      tpu.vector_store %arg4[%c2_61, %c0_62, %c0_63], %117 {strides = array<i32>} : memref<5x4x16xf32, #tpu.memory_space<vmem>>, vector<1x4x16xf32>,
    } else {
    }
    %c-2_i32_32 = arith.constant -2 : i32
    %59 = arith.cmpi eq, %44, %c-2_i32_32 : i32
    %60 = arith.extui %59 : i1 to i32
    %c0_i32_33 = arith.constant 0 : i32
    %61 = arith.cmpi ne, %60, %c0_i32_33 : i32
    scf.if %61 {
      %c14_i32 = arith.constant 14 : i32
      %102 = tpu.dynamic_rotate %46 by %c14_i32 dim 1 : vector<4x16xf32>, i32 -> vector<4x16xf32>
      %103 = vector.extract_strided_slice %46 {offsets = [0, 14], sizes = [4, 1], strides = [1, 1]} : vector<4x16xf32> to vector<4x1xf32>
      %c14_i32_58 = arith.constant 14 : i32
      %104 = vector.broadcast %c14_i32_58 : i32 to vector<4x16xi32>
      %105 = arith.cmpi eq, %1, %104 : vector<4x16xi32>
      %106 = vector.shape_cast %103 : vector<4x1xf32> to vector<4x1xf32>
      %107 = vector.broadcast %106 : vector<4x1xf32> to vector<4x16xf32>
      %108 = arith.select %105, %107, %102 : vector<4x16xi1>, vector<4x16xf32>
      %109 = vector.extract_strided_slice %46 {offsets = [0, 13], sizes = [4, 1], strides = [1, 1]} : vector<4x16xf32> to vector<4x1xf32>
      %c15_i32 = arith.constant 15 : i32
      %110 = vector.broadcast %c15_i32 : i32 to vector<4x16xi32>
      %111 = arith.cmpi eq, %1, %110 : vector<4x16xi32>
      %112 = vector.shape_cast %109 : vector<4x1xf32> to vector<4x1xf32>
      %113 = vector.broadcast %112 : vector<4x1xf32> to vector<4x16xf32>
      %114 = arith.select %111, %113, %108 : vector<4x16xi1>, vector<4x16xf32>
      %c2_59 = arith.constant 2 : index
      %c0_60 = arith.constant 0 : index
      %c0_61 = arith.constant 0 : index
      %115 = vector.load %arg4[%c2_59, %c0_60, %c0_61] : memref<5x4x16xf32, #tpu.memory_space<vmem>>, vector<1x4x16xf32>
      %116 = vector.shape_cast %115 : vector<1x4x16xf32> to vector<4x16xf32>
      %117 = vector.shape_cast %114 : vector<4x16xf32> to vector<1x4x16xf32>
      tpu.vector_store %arg4[%c2_59, %c0_60, %c0_61], %117 {strides = array<i32>} : memref<5x4x16xf32, #tpu.memory_space<vmem>>, vector<1x4x16xf32>,
    } else {
    }
    %c3_i32 = arith.constant 3 : i32
    %62 = arith.addi %0, %c3_i32 : i32
    %63 = arith.index_cast %62 : i32 to index
    %64 = memref.load %arg2[%63] : memref<5xi32, #tpu.memory_space<smem>>
    %c3 = arith.constant 3 : index
    %c0_34 = arith.constant 0 : index
    %c0_35 = arith.constant 0 : index
    %65 = vector.load %arg3[%c3, %c0_34, %c0_35] : memref<5x4x16xf32, #tpu.memory_space<vmem>>, vector<1x4x16xf32>
    %66 = vector.shape_cast %65 : vector<1x4x16xf32> to vector<4x16xf32>
    %c0_i32_36 = arith.constant 0 : i32
    %67 = arith.cmpi eq, %64, %c0_i32_36 : i32
    %68 = arith.extui %67 : i1 to i32
    %c0_i32_37 = arith.constant 0 : i32
    %69 = arith.cmpi ne, %68, %c0_i32_37 : i32
    scf.if %69 {
      %c3_58 = arith.constant 3 : index
      %c0_59 = arith.constant 0 : index
      %c0_60 = arith.constant 0 : index
      %102 = vector.load %arg4[%c3_58, %c0_59, %c0_60] : memref<5x4x16xf32, #tpu.memory_space<vmem>>, vector<1x4x16xf32>
      %103 = vector.shape_cast %102 : vector<1x4x16xf32> to vector<4x16xf32>
      %104 = vector.shape_cast %66 : vector<4x16xf32> to vector<1x4x16xf32>
      tpu.vector_store %arg4[%c3_58, %c0_59, %c0_60], %104 {strides = array<i32>} : memref<5x4x16xf32, #tpu.memory_space<vmem>>, vector<1x4x16xf32>,
    } else {
    }
    %c1_i32_38 = arith.constant 1 : i32
    %70 = arith.cmpi eq, %64, %c1_i32_38 : i32
    %71 = arith.extui %70 : i1 to i32
    %c0_i32_39 = arith.constant 0 : i32
    %72 = arith.cmpi ne, %71, %c0_i32_39 : i32
    scf.if %72 {
      %c1_i32_58 = arith.constant 1 : i32
      %102 = tpu.dynamic_rotate %66 by %c1_i32_58 dim 1 : vector<4x16xf32>, i32 -> vector<4x16xf32>
      %103 = vector.extract_strided_slice %66 {offsets = [0, 1], sizes = [4, 1], strides = [1, 1]} : vector<4x16xf32> to vector<4x1xf32>
      %c0_i32_59 = arith.constant 0 : i32
      %104 = vector.broadcast %c0_i32_59 : i32 to vector<4x16xi32>
      %105 = arith.cmpi eq, %1, %104 : vector<4x16xi32>
      %106 = vector.shape_cast %103 : vector<4x1xf32> to vector<4x1xf32>
      %107 = vector.broadcast %106 : vector<4x1xf32> to vector<4x16xf32>
      %108 = arith.select %105, %107, %102 : vector<4x16xi1>, vector<4x16xf32>
      %c3_60 = arith.constant 3 : index
      %c0_61 = arith.constant 0 : index
      %c0_62 = arith.constant 0 : index
      %109 = vector.load %arg4[%c3_60, %c0_61, %c0_62] : memref<5x4x16xf32, #tpu.memory_space<vmem>>, vector<1x4x16xf32>
      %110 = vector.shape_cast %109 : vector<1x4x16xf32> to vector<4x16xf32>
      %111 = vector.shape_cast %108 : vector<4x16xf32> to vector<1x4x16xf32>
      tpu.vector_store %arg4[%c3_60, %c0_61, %c0_62], %111 {strides = array<i32>} : memref<5x4x16xf32, #tpu.memory_space<vmem>>, vector<1x4x16xf32>,
    } else {
    }
    %c-1_i32_40 = arith.constant -1 : i32
    %73 = arith.cmpi eq, %64, %c-1_i32_40 : i32
    %74 = arith.extui %73 : i1 to i32
    %c0_i32_41 = arith.constant 0 : i32
    %75 = arith.cmpi ne, %74, %c0_i32_41 : i32
    scf.if %75 {
      %c15_i32 = arith.constant 15 : i32
      %102 = tpu.dynamic_rotate %66 by %c15_i32 dim 1 : vector<4x16xf32>, i32 -> vector<4x16xf32>
      %103 = vector.extract_strided_slice %66 {offsets = [0, 14], sizes = [4, 1], strides = [1, 1]} : vector<4x16xf32> to vector<4x1xf32>
      %c15_i32_58 = arith.constant 15 : i32
      %104 = vector.broadcast %c15_i32_58 : i32 to vector<4x16xi32>
      %105 = arith.cmpi eq, %1, %104 : vector<4x16xi32>
      %106 = vector.shape_cast %103 : vector<4x1xf32> to vector<4x1xf32>
      %107 = vector.broadcast %106 : vector<4x1xf32> to vector<4x16xf32>
      %108 = arith.select %105, %107, %102 : vector<4x16xi1>, vector<4x16xf32>
      %c3_59 = arith.constant 3 : index
      %c0_60 = arith.constant 0 : index
      %c0_61 = arith.constant 0 : index
      %109 = vector.load %arg4[%c3_59, %c0_60, %c0_61] : memref<5x4x16xf32, #tpu.memory_space<vmem>>, vector<1x4x16xf32>
      %110 = vector.shape_cast %109 : vector<1x4x16xf32> to vector<4x16xf32>
      %111 = vector.shape_cast %108 : vector<4x16xf32> to vector<1x4x16xf32>
      tpu.vector_store %arg4[%c3_59, %c0_60, %c0_61], %111 {strides = array<i32>} : memref<5x4x16xf32, #tpu.memory_space<vmem>>, vector<1x4x16xf32>,
    } else {
    }
    %c2_i32_42 = arith.constant 2 : i32
    %76 = arith.cmpi eq, %64, %c2_i32_42 : i32
    %77 = arith.extui %76 : i1 to i32
    %c0_i32_43 = arith.constant 0 : i32
    %78 = arith.cmpi ne, %77, %c0_i32_43 : i32
    scf.if %78 {
      %c2_i32_58 = arith.constant 2 : i32
      %102 = tpu.dynamic_rotate %66 by %c2_i32_58 dim 1 : vector<4x16xf32>, i32 -> vector<4x16xf32>
      %103 = vector.extract_strided_slice %66 {offsets = [0, 2], sizes = [4, 1], strides = [1, 1]} : vector<4x16xf32> to vector<4x1xf32>
      %c0_i32_59 = arith.constant 0 : i32
      %104 = vector.broadcast %c0_i32_59 : i32 to vector<4x16xi32>
      %105 = arith.cmpi eq, %1, %104 : vector<4x16xi32>
      %106 = vector.shape_cast %103 : vector<4x1xf32> to vector<4x1xf32>
      %107 = vector.broadcast %106 : vector<4x1xf32> to vector<4x16xf32>
      %108 = arith.select %105, %107, %102 : vector<4x16xi1>, vector<4x16xf32>
      %109 = vector.extract_strided_slice %66 {offsets = [0, 1], sizes = [4, 1], strides = [1, 1]} : vector<4x16xf32> to vector<4x1xf32>
      %c1_i32_60 = arith.constant 1 : i32
      %110 = vector.broadcast %c1_i32_60 : i32 to vector<4x16xi32>
      %111 = arith.cmpi eq, %1, %110 : vector<4x16xi32>
      %112 = vector.shape_cast %109 : vector<4x1xf32> to vector<4x1xf32>
      %113 = vector.broadcast %112 : vector<4x1xf32> to vector<4x16xf32>
      %114 = arith.select %111, %113, %108 : vector<4x16xi1>, vector<4x16xf32>
      %c3_61 = arith.constant 3 : index
      %c0_62 = arith.constant 0 : index
      %c0_63 = arith.constant 0 : index
      %115 = vector.load %arg4[%c3_61, %c0_62, %c0_63] : memref<5x4x16xf32, #tpu.memory_space<vmem>>, vector<1x4x16xf32>
      %116 = vector.shape_cast %115 : vector<1x4x16xf32> to vector<4x16xf32>
      %117 = vector.shape_cast %114 : vector<4x16xf32> to vector<1x4x16xf32>
      tpu.vector_store %arg4[%c3_61, %c0_62, %c0_63], %117 {strides = array<i32>} : memref<5x4x16xf32, #tpu.memory_space<vmem>>, vector<1x4x16xf32>,
    } else {
    }
    %c-2_i32_44 = arith.constant -2 : i32
    %79 = arith.cmpi eq, %64, %c-2_i32_44 : i32
    %80 = arith.extui %79 : i1 to i32
    %c0_i32_45 = arith.constant 0 : i32
    %81 = arith.cmpi ne, %80, %c0_i32_45 : i32
    scf.if %81 {
      %c14_i32 = arith.constant 14 : i32
      %102 = tpu.dynamic_rotate %66 by %c14_i32 dim 1 : vector<4x16xf32>, i32 -> vector<4x16xf32>
      %103 = vector.extract_strided_slice %66 {offsets = [0, 14], sizes = [4, 1], strides = [1, 1]} : vector<4x16xf32> to vector<4x1xf32>
      %c14_i32_58 = arith.constant 14 : i32
      %104 = vector.broadcast %c14_i32_58 : i32 to vector<4x16xi32>
      %105 = arith.cmpi eq, %1, %104 : vector<4x16xi32>
      %106 = vector.shape_cast %103 : vector<4x1xf32> to vector<4x1xf32>
      %107 = vector.broadcast %106 : vector<4x1xf32> to vector<4x16xf32>
      %108 = arith.select %105, %107, %102 : vector<4x16xi1>, vector<4x16xf32>
      %109 = vector.extract_strided_slice %66 {offsets = [0, 13], sizes = [4, 1], strides = [1, 1]} : vector<4x16xf32> to vector<4x1xf32>
      %c15_i32 = arith.constant 15 : i32
      %110 = vector.broadcast %c15_i32 : i32 to vector<4x16xi32>
      %111 = arith.cmpi eq, %1, %110 : vector<4x16xi32>
      %112 = vector.shape_cast %109 : vector<4x1xf32> to vector<4x1xf32>
      %113 = vector.broadcast %112 : vector<4x1xf32> to vector<4x16xf32>
      %114 = arith.select %111, %113, %108 : vector<4x16xi1>, vector<4x16xf32>
      %c3_59 = arith.constant 3 : index
      %c0_60 = arith.constant 0 : index
      %c0_61 = arith.constant 0 : index
      %115 = vector.load %arg4[%c3_59, %c0_60, %c0_61] : memref<5x4x16xf32, #tpu.memory_space<vmem>>, vector<1x4x16xf32>
      %116 = vector.shape_cast %115 : vector<1x4x16xf32> to vector<4x16xf32>
      %117 = vector.shape_cast %114 : vector<4x16xf32> to vector<1x4x16xf32>
      tpu.vector_store %arg4[%c3_59, %c0_60, %c0_61], %117 {strides = array<i32>} : memref<5x4x16xf32, #tpu.memory_space<vmem>>, vector<1x4x16xf32>,
    } else {
    }
    %c4_i32 = arith.constant 4 : i32
    %82 = arith.addi %0, %c4_i32 : i32
    %83 = arith.index_cast %82 : i32 to index
    %84 = memref.load %arg2[%83] : memref<5xi32, #tpu.memory_space<smem>>
    %c4 = arith.constant 4 : index
    %c0_46 = arith.constant 0 : index
    %c0_47 = arith.constant 0 : index
    %85 = vector.load %arg3[%c4, %c0_46, %c0_47] : memref<5x4x16xf32, #tpu.memory_space<vmem>>, vector<1x4x16xf32>
    %86 = vector.shape_cast %85 : vector<1x4x16xf32> to vector<4x16xf32>
    %c0_i32_48 = arith.constant 0 : i32
    %87 = arith.cmpi eq, %84, %c0_i32_48 : i32
    %88 = arith.extui %87 : i1 to i32
    %c0_i32_49 = arith.constant 0 : i32
    %89 = arith.cmpi ne, %88, %c0_i32_49 : i32
    scf.if %89 {
      %c4_58 = arith.constant 4 : index
      %c0_59 = arith.constant 0 : index
      %c0_60 = arith.constant 0 : index
      %102 = vector.load %arg4[%c4_58, %c0_59, %c0_60] : memref<5x4x16xf32, #tpu.memory_space<vmem>>, vector<1x4x16xf32>
      %103 = vector.shape_cast %102 : vector<1x4x16xf32> to vector<4x16xf32>
      %104 = vector.shape_cast %86 : vector<4x16xf32> to vector<1x4x16xf32>
      tpu.vector_store %arg4[%c4_58, %c0_59, %c0_60], %104 {strides = array<i32>} : memref<5x4x16xf32, #tpu.memory_space<vmem>>, vector<1x4x16xf32>,
    } else {
    }
    %c1_i32_50 = arith.constant 1 : i32
    %90 = arith.cmpi eq, %84, %c1_i32_50 : i32
    %91 = arith.extui %90 : i1 to i32
    %c0_i32_51 = arith.constant 0 : i32
    %92 = arith.cmpi ne, %91, %c0_i32_51 : i32
    scf.if %92 {
      %c1_i32_58 = arith.constant 1 : i32
      %102 = tpu.dynamic_rotate %86 by %c1_i32_58 dim 1 : vector<4x16xf32>, i32 -> vector<4x16xf32>
      %103 = vector.extract_strided_slice %86 {offsets = [0, 1], sizes = [4, 1], strides = [1, 1]} : vector<4x16xf32> to vector<4x1xf32>
      %c0_i32_59 = arith.constant 0 : i32
      %104 = vector.broadcast %c0_i32_59 : i32 to vector<4x16xi32>
      %105 = arith.cmpi eq, %1, %104 : vector<4x16xi32>
      %106 = vector.shape_cast %103 : vector<4x1xf32> to vector<4x1xf32>
      %107 = vector.broadcast %106 : vector<4x1xf32> to vector<4x16xf32>
      %108 = arith.select %105, %107, %102 : vector<4x16xi1>, vector<4x16xf32>
      %c4_60 = arith.constant 4 : index
      %c0_61 = arith.constant 0 : index
      %c0_62 = arith.constant 0 : index
      %109 = vector.load %arg4[%c4_60, %c0_61, %c0_62] : memref<5x4x16xf32, #tpu.memory_space<vmem>>, vector<1x4x16xf32>
      %110 = vector.shape_cast %109 : vector<1x4x16xf32> to vector<4x16xf32>
      %111 = vector.shape_cast %108 : vector<4x16xf32> to vector<1x4x16xf32>
      tpu.vector_store %arg4[%c4_60, %c0_61, %c0_62], %111 {strides = array<i32>} : memref<5x4x16xf32, #tpu.memory_space<vmem>>, vector<1x4x16xf32>,
    } else {
    }
    %c-1_i32_52 = arith.constant -1 : i32
    %93 = arith.cmpi eq, %84, %c-1_i32_52 : i32
    %94 = arith.extui %93 : i1 to i32
    %c0_i32_53 = arith.constant 0 : i32
    %95 = arith.cmpi ne, %94, %c0_i32_53 : i32
    scf.if %95 {
      %c15_i32 = arith.constant 15 : i32
      %102 = tpu.dynamic_rotate %86 by %c15_i32 dim 1 : vector<4x16xf32>, i32 -> vector<4x16xf32>
      %103 = vector.extract_strided_slice %86 {offsets = [0, 14], sizes = [4, 1], strides = [1, 1]} : vector<4x16xf32> to vector<4x1xf32>
      %c15_i32_58 = arith.constant 15 : i32
      %104 = vector.broadcast %c15_i32_58 : i32 to vector<4x16xi32>
      %105 = arith.cmpi eq, %1, %104 : vector<4x16xi32>
      %106 = vector.shape_cast %103 : vector<4x1xf32> to vector<4x1xf32>
      %107 = vector.broadcast %106 : vector<4x1xf32> to vector<4x16xf32>
      %108 = arith.select %105, %107, %102 : vector<4x16xi1>, vector<4x16xf32>
      %c4_59 = arith.constant 4 : index
      %c0_60 = arith.constant 0 : index
      %c0_61 = arith.constant 0 : index
      %109 = vector.load %arg4[%c4_59, %c0_60, %c0_61] : memref<5x4x16xf32, #tpu.memory_space<vmem>>, vector<1x4x16xf32>
      %110 = vector.shape_cast %109 : vector<1x4x16xf32> to vector<4x16xf32>
      %111 = vector.shape_cast %108 : vector<4x16xf32> to vector<1x4x16xf32>
      tpu.vector_store %arg4[%c4_59, %c0_60, %c0_61], %111 {strides = array<i32>} : memref<5x4x16xf32, #tpu.memory_space<vmem>>, vector<1x4x16xf32>,
    } else {
    }
    %c2_i32_54 = arith.constant 2 : i32
    %96 = arith.cmpi eq, %84, %c2_i32_54 : i32
    %97 = arith.extui %96 : i1 to i32
    %c0_i32_55 = arith.constant 0 : i32
    %98 = arith.cmpi ne, %97, %c0_i32_55 : i32
    scf.if %98 {
      %c2_i32_58 = arith.constant 2 : i32
      %102 = tpu.dynamic_rotate %86 by %c2_i32_58 dim 1 : vector<4x16xf32>, i32 -> vector<4x16xf32>
      %103 = vector.extract_strided_slice %86 {offsets = [0, 2], sizes = [4, 1], strides = [1, 1]} : vector<4x16xf32> to vector<4x1xf32>
      %c0_i32_59 = arith.constant 0 : i32
      %104 = vector.broadcast %c0_i32_59 : i32 to vector<4x16xi32>
      %105 = arith.cmpi eq, %1, %104 : vector<4x16xi32>
      %106 = vector.shape_cast %103 : vector<4x1xf32> to vector<4x1xf32>
      %107 = vector.broadcast %106 : vector<4x1xf32> to vector<4x16xf32>
      %108 = arith.select %105, %107, %102 : vector<4x16xi1>, vector<4x16xf32>
      %109 = vector.extract_strided_slice %86 {offsets = [0, 1], sizes = [4, 1], strides = [1, 1]} : vector<4x16xf32> to vector<4x1xf32>
      %c1_i32_60 = arith.constant 1 : i32
      %110 = vector.broadcast %c1_i32_60 : i32 to vector<4x16xi32>
      %111 = arith.cmpi eq, %1, %110 : vector<4x16xi32>
      %112 = vector.shape_cast %109 : vector<4x1xf32> to vector<4x1xf32>
      %113 = vector.broadcast %112 : vector<4x1xf32> to vector<4x16xf32>
      %114 = arith.select %111, %113, %108 : vector<4x16xi1>, vector<4x16xf32>
      %c4_61 = arith.constant 4 : index
      %c0_62 = arith.constant 0 : index
      %c0_63 = arith.constant 0 : index
      %115 = vector.load %arg4[%c4_61, %c0_62, %c0_63] : memref<5x4x16xf32, #tpu.memory_space<vmem>>, vector<1x4x16xf32>
      %116 = vector.shape_cast %115 : vector<1x4x16xf32> to vector<4x16xf32>
      %117 = vector.shape_cast %114 : vector<4x16xf32> to vector<1x4x16xf32>
      tpu.vector_store %arg4[%c4_61, %c0_62, %c0_63], %117 {strides = array<i32>} : memref<5x4x16xf32, #tpu.memory_space<vmem>>, vector<1x4x16xf32>,
    } else {
    }
    %c-2_i32_56 = arith.constant -2 : i32
    %99 = arith.cmpi eq, %84, %c-2_i32_56 : i32
    %100 = arith.extui %99 : i1 to i32
    %c0_i32_57 = arith.constant 0 : i32
    %101 = arith.cmpi ne, %100, %c0_i32_57 : i32
    scf.if %101 {
      %c14_i32 = arith.constant 14 : i32
      %102 = tpu.dynamic_rotate %86 by %c14_i32 dim 1 : vector<4x16xf32>, i32 -> vector<4x16xf32>
      %103 = vector.extract_strided_slice %86 {offsets = [0, 14], sizes = [4, 1], strides = [1, 1]} : vector<4x16xf32> to vector<4x1xf32>
      %c14_i32_58 = arith.constant 14 : i32
      %104 = vector.broadcast %c14_i32_58 : i32 to vector<4x16xi32>
      %105 = arith.cmpi eq, %1, %104 : vector<4x16xi32>
      %106 = vector.shape_cast %103 : vector<4x1xf32> to vector<4x1xf32>
      %107 = vector.broadcast %106 : vector<4x1xf32> to vector<4x16xf32>
      %108 = arith.select %105, %107, %102 : vector<4x16xi1>, vector<4x16xf32>
      %109 = vector.extract_strided_slice %86 {offsets = [0, 13], sizes = [4, 1], strides = [1, 1]} : vector<4x16xf32> to vector<4x1xf32>
      %c15_i32 = arith.constant 15 : i32
      %110 = vector.broadcast %c15_i32 : i32 to vector<4x16xi32>
      %111 = arith.cmpi eq, %1, %110 : vector<4x16xi32>
      %112 = vector.shape_cast %109 : vector<4x1xf32> to vector<4x1xf32>
      %113 = vector.broadcast %112 : vector<4x1xf32> to vector<4x16xf32>
      %114 = arith.select %111, %113, %108 : vector<4x16xi1>, vector<4x16xf32>
      %c4_59 = arith.constant 4 : index
      %c0_60 = arith.constant 0 : index
      %c0_61 = arith.constant 0 : index
      %115 = vector.load %arg4[%c4_59, %c0_60, %c0_61] : memref<5x4x16xf32, #tpu.memory_space<vmem>>, vector<1x4x16xf32>
      %116 = vector.shape_cast %115 : vector<1x4x16xf32> to vector<4x16xf32>
      %117 = vector.shape_cast %114 : vector<4x16xf32> to vector<1x4x16xf32>
      tpu.vector_store %arg4[%c4_59, %c0_60, %c0_61], %117 {strides = array<i32>} : memref<5x4x16xf32, #tpu.memory_space<vmem>>, vector<1x4x16xf32>,
    } else {
    }
    return
  }
  func.func @transform_0(%arg0: i32, %arg1: i32, %arg2: memref<5xi32, #tpu.memory_space<smem>>) -> (i32, i32, i32) {
    %c0_i32 = arith.constant 0 : i32
    %c0_i32_0 = arith.constant 0 : i32
    return %arg0, %arg1, %c0_i32 : i32, i32, i32
  }
  func.func @transform_1(%arg0: i32, %arg1: i32, %arg2: memref<5xi32, #tpu.memory_space<smem>>) -> (i32, i32, i32) {
    %c0_i32 = arith.constant 0 : i32
    %c0_i32_0 = arith.constant 0 : i32
    return %arg0, %arg1, %c0_i32 : i32, i32, i32
  }
}

</mosaic_0001>

<llo_original>
// kernel: tpu_custom_call.1
$region0: #{tpu_custom_call.1}
  #allocation0 [shape = 'u32[]', space=smem, size = 0x4, offset = 0x4, fixed_abs, tag = 'smem constant byte address 0x4 - core index']
  #allocation1 [shape = 'u32[72,128]{1,0:T(1,128)}', space=vmem, size = 0x9000, scoped, tag = 'internal scratch']
  #allocation2 [shape = 's32[1]{0}', space=sflag, size = 0x4, scoped, tag = 'scoped memory for tpu_custom_call.1']
  #allocation3 [shape = 'u8[512]{0}', space=smem, size = 0x200, scoped, tag = 'prefetched SMEM operand 0']
  %s0 = inlined_call_operand.hbm [shape: s32[5], index: 0, kind: input, shape index: {}]
  %s1 = inlined_call_operand.hbm [shape: f32[5,4,16], index: 1, kind: input, shape index: {}]
  %s2 = inlined_call_operand.hbm [shape: f32[5,4,16], index: 2, kind: output, shape index: {}]
  %s3 = sld [smem:[#allocation0]]
  $region118: #{tpu_custom_call.1} parent=0
    _
  %s5 = ssub.s32 1, %s3
  %s6 = scalar_select 0, %s5, %s3
  %s8 = sshll.u32 %s0, 4
  %s9 = int_to_ptr.hbm [resolvable:$true] %s8
  %11 = dma.hbm_to_smem %s9, 16, [#allocation3], [#allocation2]
  %13 = dma.done [#allocation2], 16
  %14 = sfence
  $region1: #{tpu_custom_call.1} parent=0
    #allocation4 [shape = 'u8[10240]{0}', space=vmem, size = 0x2800, scoped, tag = 'input window, operand 1, single buffered']
    #allocation5 [shape = 's32[1]{0}', space=sflag, size = 0x4, scoped, tag = 'scoped memory for tpu_custom_call.1']
    #allocation6 [shape = 's32[1]{0}', space=sflag, size = 0x4, scoped, tag = 'scoped memory for tpu_custom_call.1']
    #allocation7 [shape = 'u8[10240]{0}', space=vmem, size = 0x2800, scoped, tag = 'output window, operand 0, single buffered']
    %15 = vsyncpa [#allocation5], 0
    %16 = vsyncpa [#allocation6], 0
    // Predicated region
    $region2: #{tpu_custom_call.1} parent=1 // pred_check
      _
    $region3: #{tpu_custom_call.1} parent=1 // pred_check_branch
      %18 = sbr.rel (0) target = $region5
    $region4: #{tpu_custom_call.1} parent=1 // pred_region
      %20 = vsyncadd [#allocation5], 0
      %s21 = sshll.u32 %s1, 4
      %s22 = int_to_ptr.hbm [resolvable:$true] %s21
      %s23 = sshll.u32 [#allocation4], 4
      %s24 = int_to_ptr.vmem [resolvable:$true] %s23
      %29 = dma.hbm_to_vmem [thread:$0]  %s22, 320, %s24, [#allocation5], 64, 64, 4
    $region5: #{tpu_custom_call.1} parent=1 // pred_fallthru
      _
    // Predicated region
    $region6: #{tpu_custom_call.1} parent=1 // pred_check
      _
    $region7: #{tpu_custom_call.1} parent=1 // pred_check_branch
      %31 = sbr.rel (0) target = $region9
    $region8: #{tpu_custom_call.1} parent=1 // pred_region
      %33 = dma.done [#allocation5], 320
    $region9: #{tpu_custom_call.1} parent=1 // pred_fallthru
      _
    %s34 = smul.u32 0, 5
    %v35 = vlaneseq
    %v36 = vand.u32 %v35, 127
    %s37 = sld [smem:[#allocation3 + %s34]]
    %v38 = vld [vmem:[#allocation4] sm:$0xf]
    %p39 = scmp.eq.s32.totalorder %s37, 0
    // Predicated region
    $region10: #{tpu_custom_call.1} parent=1 // pred_check
      %p40 = pneg %p39
    $region11: #{tpu_custom_call.1} parent=1 // pred_check_branch
      %42 = sbr.rel (%p40) target = $region13
    $region12: #{tpu_custom_call.1} parent=1 // pred_region
      %vm43 = vcmask 125952
      %44 = vst.msk [vmem:[#allocation7] sm:$0xf] %vm43, %v38
    $region13: #{tpu_custom_call.1} parent=1 // pred_fallthru
      _
    %p45 = scmp.eq.s32.totalorder %s37, 1
    // Predicated region
    $region14: #{tpu_custom_call.1} parent=1 // pred_check
      %p46 = pneg %p45
    $region15: #{tpu_custom_call.1} parent=1 // pred_check_branch
      %48 = sbr.rel (%p46) target = $region17
    $region16: #{tpu_custom_call.1} parent=1 // pred_region
      %vm49 = vcmask 1047680
      %50 = vrot.lane.b32.xlu0 %v38, 16
      %v51 = vpop.permute.xlu0 %50
      %v52 = vsel %vm49, %v51, %v38
      %53 = vrot.lane.b32.xlu0 %v52, 16
      %v54 = vpop.permute.xlu0 %53
      %v55 = vsel %vm49, %v54, %v38
      %vm56 = vcmp.eq.s32.totalorder %v36, 0
      %58 = vset.pattern.permute.xlu0 1
      %59 = vperm.xlu0 %58, %v38
      %v60 = vpop.permute.xlu0 %59
      %63 = vrot.lane.b32.xlu0 %v55, 113
      %v64 = vpop.permute.xlu0 %63
      %v66 = vsel %vm56, %v60, %v64
      %vm67 = vcmask 125952
      %68 = vst.msk [vmem:[#allocation7] sm:$0xf] %vm67, %v66
    $region17: #{tpu_custom_call.1} parent=1 // pred_fallthru
      _
    %p69 = scmp.eq.s32.totalorder %s37, 4294967295
    // Predicated region
    $region18: #{tpu_custom_call.1} parent=1 // pred_check
      %p70 = pneg %p69
    $region19: #{tpu_custom_call.1} parent=1 // pred_check_branch
      %72 = sbr.rel (%p70) target = $region21
    $region20: #{tpu_custom_call.1} parent=1 // pred_region
      %vm73 = vcmask 1047680
      %74 = vrot.lane.b32.xlu0 %v38, 16
      %v75 = vpop.permute.xlu0 %74
      %v76 = vsel %vm73, %v75, %v38
      %77 = vrot.lane.b32.xlu0 %v76, 16
      %v78 = vpop.permute.xlu0 %77
      %v79 = vsel %vm73, %v78, %v38
      %vm80 = vcmp.eq.s32.totalorder %v36, 15
      %82 = vset.pattern.permute.xlu0 14
      %83 = vperm.xlu0 %82, %v38
      %v84 = vpop.permute.xlu0 %83
      %87 = vrot.lane.b32.xlu0 %v79, 127
      %v88 = vpop.permute.xlu0 %87
      %v90 = vsel %vm80, %v84, %v88
      %vm91 = vcmask 125952
      %92 = vst.msk [vmem:[#allocation7] sm:$0xf] %vm91, %v90
    $region21: #{tpu_custom_call.1} parent=1 // pred_fallthru
      _
    %p93 = scmp.eq.s32.totalorder %s37, 2
    // Predicated region
    $region22: #{tpu_custom_call.1} parent=1 // pred_check
      %p94 = pneg %p93
    $region23: #{tpu_custom_call.1} parent=1 // pred_check_branch
      %96 = sbr.rel (%p94) target = $region25
    $region24: #{tpu_custom_call.1} parent=1 // pred_region
      %vm97 = vcmask 1047680
      %98 = vrot.lane.b32.xlu0 %v38, 16
      %v99 = vpop.permute.xlu0 %98
      %v100 = vsel %vm97, %v99, %v38
      %101 = vrot.lane.b32.xlu0 %v100, 16
      %v102 = vpop.permute.xlu0 %101
      %v103 = vsel %vm97, %v102, %v38
      %vm104 = vcmp.eq.s32.totalorder %v36, 0
      %106 = vset.pattern.permute.xlu0 2
      %107 = vperm.xlu0 %106, %v38
      %v108 = vpop.permute.xlu0 %107
      %111 = vrot.lane.b32.xlu0 %v103, 114
      %v112 = vpop.permute.xlu0 %111
      %v114 = vsel %vm104, %v108, %v112
      %vm115 = vcmp.eq.s32.totalorder %v36, 1
      %116 = vset.pattern.permute.xlu0 1
      %117 = vperm.xlu0 %116, %v38
      %v118 = vpop.permute.xlu0 %117
      %v120 = vsel %vm115, %v118, %v114
      %vm121 = vcmask 125952
      %122 = vst.msk [vmem:[#allocation7] sm:$0xf] %vm121, %v120
    $region25: #{tpu_custom_call.1} parent=1 // pred_fallthru
      _
    %p123 = scmp.eq.s32.totalorder %s37, 4294967294
    // Predicated region
    $region26: #{tpu_custom_call.1} parent=1 // pred_check
      %p124 = pneg %p123
    $region27: #{tpu_custom_call.1} parent=1 // pred_check_branch
      %126 = sbr.rel (%p124) target = $region29
    $region28: #{tpu_custom_call.1} parent=1 // pred_region
      %vm127 = vcmask 1047680
      %128 = vrot.lane.b32.xlu0 %v38, 16
      %v129 = vpop.permute.xlu0 %128
      %v130 = vsel %vm127, %v129, %v38
      %131 = vrot.lane.b32.xlu0 %v130, 16
      %v132 = vpop.permute.xlu0 %131
      %v133 = vsel %vm127, %v132, %v38
      %vm134 = vcmp.eq.s32.totalorder %v36, 14
      %136 = vset.pattern.permute.xlu0 14
      %137 = vperm.xlu0 %136, %v38
      %v138 = vpop.permute.xlu0 %137
      %141 = vrot.lane.b32.xlu0 %v133, 126
      %v142 = vpop.permute.xlu0 %141
      %v144 = vsel %vm134, %v138, %v142
      %vm145 = vcmp.eq.s32.totalorder %v36, 15
      %146 = vset.pattern.permute.xlu0 13
      %147 = vperm.xlu0 %146, %v38
      %v148 = vpop.permute.xlu0 %147
      %v150 = vsel %vm145, %v148, %v144
      %vm151 = vcmask 125952
      %152 = vst.msk [vmem:[#allocation7] sm:$0xf] %vm151, %v150
    $region29: #{tpu_custom_call.1} parent=1 // pred_fallthru
      _
    %s153 = sadd.s32 %s34, 1
    %s154 = sld [smem:[#allocation3 + %s153]]
    %s155 = scalar_lea.vmem [#allocation4], 4
    %v156 = vld [vmem:[%s155] sm:$0xf]
    %p157 = scmp.eq.s32.totalorder %s154, 0
    // Predicated region
    $region30: #{tpu_custom_call.1} parent=1 // pred_check
      %p158 = pneg %p157
    $region31: #{tpu_custom_call.1} parent=1 // pred_check_branch
      %160 = sbr.rel (%p158) target = $region33
    $region32: #{tpu_custom_call.1} parent=1 // pred_region
      %s161 = scalar_lea.vmem [#allocation7], 4
      %vm162 = vcmask 125952
      %163 = vst.msk [vmem:[%s161] sm:$0xf] %vm162, %v156
    $region33: #{tpu_custom_call.1} parent=1 // pred_fallthru
      _
    %p164 = scmp.eq.s32.totalorder %s154, 1
    // Predicated region
    $region34: #{tpu_custom_call.1} parent=1 // pred_check
      %p165 = pneg %p164
    $region35: #{tpu_custom_call.1} parent=1 // pred_check_branch
      %167 = sbr.rel (%p165) target = $region37
    $region36: #{tpu_custom_call.1} parent=1 // pred_region
      %vm168 = vcmask 1047680
      %169 = vrot.lane.b32.xlu0 %v156, 16
      %v170 = vpop.permute.xlu0 %169
      %v171 = vsel %vm168, %v170, %v156
      %172 = vrot.lane.b32.xlu0 %v171, 16
      %v173 = vpop.permute.xlu0 %172
      %v174 = vsel %vm168, %v173, %v156
      %vm175 = vcmp.eq.s32.totalorder %v36, 0
      %177 = vset.pattern.permute.xlu0 1
      %178 = vperm.xlu0 %177, %v156
      %v179 = vpop.permute.xlu0 %178
      %182 = vrot.lane.b32.xlu0 %v174, 113
      %v183 = vpop.permute.xlu0 %182
      %v185 = vsel %vm175, %v179, %v183
      %s186 = scalar_lea.vmem [#allocation7], 4
      %vm187 = vcmask 125952
      %188 = vst.msk [vmem:[%s186] sm:$0xf] %vm187, %v185
    $region37: #{tpu_custom_call.1} parent=1 // pred_fallthru
      _
    %p189 = scmp.eq.s32.totalorder %s154, 4294967295
    // Predicated region
    $region38: #{tpu_custom_call.1} parent=1 // pred_check
      %p190 = pneg %p189
    $region39: #{tpu_custom_call.1} parent=1 // pred_check_branch
      %192 = sbr.rel (%p190) target = $region41
    $region40: #{tpu_custom_call.1} parent=1 // pred_region
      %vm193 = vcmask 1047680
      %194 = vrot.lane.b32.xlu0 %v156, 16
      %v195 = vpop.permute.xlu0 %194
      %v196 = vsel %vm193, %v195, %v156
      %197 = vrot.lane.b32.xlu0 %v196, 16
      %v198 = vpop.permute.xlu0 %197
      %v199 = vsel %vm193, %v198, %v156
      %vm200 = vcmp.eq.s32.totalorder %v36, 15
      %202 = vset.pattern.permute.xlu0 14
      %203 = vperm.xlu0 %202, %v156
      %v204 = vpop.permute.xlu0 %203
      %207 = vrot.lane.b32.xlu0 %v199, 127
      %v208 = vpop.permute.xlu0 %207
      %v210 = vsel %vm200, %v204, %v208
      %s211 = scalar_lea.vmem [#allocation7], 4
      %vm212 = vcmask 125952
      %213 = vst.msk [vmem:[%s211] sm:$0xf] %vm212, %v210
    $region41: #{tpu_custom_call.1} parent=1 // pred_fallthru
      _
    %p214 = scmp.eq.s32.totalorder %s154, 2
    // Predicated region
    $region42: #{tpu_custom_call.1} parent=1 // pred_check
      %p215 = pneg %p214
    $region43: #{tpu_custom_call.1} parent=1 // pred_check_branch
      %217 = sbr.rel (%p215) target = $region45
    $region44: #{tpu_custom_call.1} parent=1 // pred_region
      %vm218 = vcmask 1047680
      %219 = vrot.lane.b32.xlu0 %v156, 16
      %v220 = vpop.permute.xlu0 %219
      %v221 = vsel %vm218, %v220, %v156
      %222 = vrot.lane.b32.xlu0 %v221, 16
      %v223 = vpop.permute.xlu0 %222
      %v224 = vsel %vm218, %v223, %v156
      %vm225 = vcmp.eq.s32.totalorder %v36, 0
      %227 = vset.pattern.permute.xlu0 2
      %228 = vperm.xlu0 %227, %v156
      %v229 = vpop.permute.xlu0 %228
      %232 = vrot.lane.b32.xlu0 %v224, 114
      %v233 = vpop.permute.xlu0 %232
      %v235 = vsel %vm225, %v229, %v233
      %vm236 = vcmp.eq.s32.totalorder %v36, 1
      %237 = vset.pattern.permute.xlu0 1
      %238 = vperm.xlu0 %237, %v156
      %v239 = vpop.permute.xlu0 %238
      %v241 = vsel %vm236, %v239, %v235
      %s242 = scalar_lea.vmem [#allocation7], 4
      %vm243 = vcmask 125952
      %244 = vst.msk [vmem:[%s242] sm:$0xf] %vm243, %v241
    $region45: #{tpu_custom_call.1} parent=1 // pred_fallthru
      _
    %p245 = scmp.eq.s32.totalorder %s154, 4294967294
    // Predicated region
    $region46: #{tpu_custom_call.1} parent=1 // pred_check
      %p246 = pneg %p245
    $region47: #{tpu_custom_call.1} parent=1 // pred_check_branch
      %248 = sbr.rel (%p246) target = $region49
    $region48: #{tpu_custom_call.1} parent=1 // pred_region
      %vm249 = vcmask 1047680
      %250 = vrot.lane.b32.xlu0 %v156, 16
      %v251 = vpop.permute.xlu0 %250
      %v252 = vsel %vm249, %v251, %v156
      %253 = vrot.lane.b32.xlu0 %v252, 16
      %v254 = vpop.permute.xlu0 %253
      %v255 = vsel %vm249, %v254, %v156
      %vm256 = vcmp.eq.s32.totalorder %v36, 14
      %258 = vset.pattern.permute.xlu0 14
      %259 = vperm.xlu0 %258, %v156
      %v260 = vpop.permute.xlu0 %259
      %263 = vrot.lane.b32.xlu0 %v255, 126
      %v264 = vpop.permute.xlu0 %263
      %v266 = vsel %vm256, %v260, %v264
      %vm267 = vcmp.eq.s32.totalorder %v36, 15
      %268 = vset.pattern.permute.xlu0 13
      %269 = vperm.xlu0 %268, %v156
      %v270 = vpop.permute.xlu0 %269
      %v272 = vsel %vm267, %v270, %v266
      %s273 = scalar_lea.vmem [#allocation7], 4
      %vm274 = vcmask 125952
      %275 = vst.msk [vmem:[%s273] sm:$0xf] %vm274, %v272
    $region49: #{tpu_custom_call.1} parent=1 // pred_fallthru
      _
    %s276 = sadd.s32 %s34, 2
    %s277 = sld [smem:[#allocation3 + %s276]]
    %s278 = scalar_lea.vmem [#allocation4], 8
    %v279 = vld [vmem:[%s278] sm:$0xf]
    %p280 = scmp.eq.s32.totalorder %s277, 0
    // Predicated region
    $region50: #{tpu_custom_call.1} parent=1 // pred_check
      %p281 = pneg %p280
    $region51: #{tpu_custom_call.1} parent=1 // pred_check_branch
      %283 = sbr.rel (%p281) target = $region53
    $region52: #{tpu_custom_call.1} parent=1 // pred_region
      %s284 = scalar_lea.vmem [#allocation7], 8
      %vm285 = vcmask 125952
      %286 = vst.msk [vmem:[%s284] sm:$0xf] %vm285, %v279
    $region53: #{tpu_custom_call.1} parent=1 // pred_fallthru
      _
    %p287 = scmp.eq.s32.totalorder %s277, 1
    // Predicated region
    $region54: #{tpu_custom_call.1} parent=1 // pred_check
      %p288 = pneg %p287
    $region55: #{tpu_custom_call.1} parent=1 // pred_check_branch
      %290 = sbr.rel (%p288) target = $region57
    $region56: #{tpu_custom_call.1} parent=1 // pred_region
      %vm291 = vcmask 1047680
      %292 = vrot.lane.b32.xlu0 %v279, 16
      %v293 = vpop.permute.xlu0 %292
      %v294 = vsel %vm291, %v293, %v279
      %295 = vrot.lane.b32.xlu0 %v294, 16
      %v296 = vpop.permute.xlu0 %295
      %v297 = vsel %vm291, %v296, %v279
      %vm298 = vcmp.eq.s32.totalorder %v36, 0
      %300 = vset.pattern.permute.xlu0 1
      %301 = vperm.xlu0 %300, %v279
      %v302 = vpop.permute.xlu0 %301
      %305 = vrot.lane.b32.xlu0 %v297, 113
      %v306 = vpop.permute.xlu0 %305
      %v308 = vsel %vm298, %v302, %v306
      %s309 = scalar_lea.vmem [#allocation7], 8
      %vm310 = vcmask 125952
      %311 = vst.msk [vmem:[%s309] sm:$0xf] %vm310, %v308
    $region57: #{tpu_custom_call.1} parent=1 // pred_fallthru
      _
    %p312 = scmp.eq.s32.totalorder %s277, 4294967295
    // Predicated region
    $region58: #{tpu_custom_call.1} parent=1 // pred_check
      %p313 = pneg %p312
    $region59: #{tpu_custom_call.1} parent=1 // pred_check_branch
      %315 = sbr.rel (%p313) target = $region61
    $region60: #{tpu_custom_call.1} parent=1 // pred_region
      %vm316 = vcmask 1047680
      %317 = vrot.lane.b32.xlu0 %v279, 16
      %v318 = vpop.permute.xlu0 %317
      %v319 = vsel %vm316, %v318, %v279
      %320 = vrot.lane.b32.xlu0 %v319, 16
      %v321 = vpop.permute.xlu0 %320
      %v322 = vsel %vm316, %v321, %v279
      %vm323 = vcmp.eq.s32.totalorder %v36, 15
      %325 = vset.pattern.permute.xlu0 14
      %326 = vperm.xlu0 %325, %v279
      %v327 = vpop.permute.xlu0 %326
      %330 = vrot.lane.b32.xlu0 %v322, 127
      %v331 = vpop.permute.xlu0 %330
      %v333 = vsel %vm323, %v327, %v331
      %s334 = scalar_lea.vmem [#allocation7], 8
      %vm335 = vcmask 125952
      %336 = vst.msk [vmem:[%s334] sm:$0xf] %vm335, %v333
    $region61: #{tpu_custom_call.1} parent=1 // pred_fallthru
      _
    %p337 = scmp.eq.s32.totalorder %s277, 2
    // Predicated region
    $region62: #{tpu_custom_call.1} parent=1 // pred_check
      %p338 = pneg %p337
    $region63: #{tpu_custom_call.1} parent=1 // pred_check_branch
      %340 = sbr.rel (%p338) target = $region65
    $region64: #{tpu_custom_call.1} parent=1 // pred_region
      %vm341 = vcmask 1047680
      %342 = vrot.lane.b32.xlu0 %v279, 16
      %v343 = vpop.permute.xlu0 %342
      %v344 = vsel %vm341, %v343, %v279
      %345 = vrot.lane.b32.xlu0 %v344, 16
      %v346 = vpop.permute.xlu0 %345
      %v347 = vsel %vm341, %v346, %v279
      %vm348 = vcmp.eq.s32.totalorder %v36, 0
      %350 = vset.pattern.permute.xlu0 2
      %351 = vperm.xlu0 %350, %v279
      %v352 = vpop.permute.xlu0 %351
      %355 = vrot.lane.b32.xlu0 %v347, 114
      %v356 = vpop.permute.xlu0 %355
      %v358 = vsel %vm348, %v352, %v356
      %vm359 = vcmp.eq.s32.totalorder %v36, 1
      %360 = vset.pattern.permute.xlu0 1
      %361 = vperm.xlu0 %360, %v279
      %v362 = vpop.permute.xlu0 %361
      %v364 = vsel %vm359, %v362, %v358
      %s365 = scalar_lea.vmem [#allocation7], 8
      %vm366 = vcmask 125952
      %367 = vst.msk [vmem:[%s365] sm:$0xf] %vm366, %v364
    $region65: #{tpu_custom_call.1} parent=1 // pred_fallthru
      _
    %p368 = scmp.eq.s32.totalorder %s277, 4294967294
    // Predicated region
    $region66: #{tpu_custom_call.1} parent=1 // pred_check
      %p369 = pneg %p368
    $region67: #{tpu_custom_call.1} parent=1 // pred_check_branch
      %371 = sbr.rel (%p369) target = $region69
    $region68: #{tpu_custom_call.1} parent=1 // pred_region
      %vm372 = vcmask 1047680
      %373 = vrot.lane.b32.xlu0 %v279, 16
      %v374 = vpop.permute.xlu0 %373
      %v375 = vsel %vm372, %v374, %v279
      %376 = vrot.lane.b32.xlu0 %v375, 16
      %v377 = vpop.permute.xlu0 %376
      %v378 = vsel %vm372, %v377, %v279
      %vm379 = vcmp.eq.s32.totalorder %v36, 14
      %381 = vset.pattern.permute.xlu0 14
      %382 = vperm.xlu0 %381, %v279
      %v383 = vpop.permute.xlu0 %382
      %386 = vrot.lane.b32.xlu0 %v378, 126
      %v387 = vpop.permute.xlu0 %386
      %v389 = vsel %vm379, %v383, %v387
      %vm390 = vcmp.eq.s32.totalorder %v36, 15
      %391 = vset.pattern.permute.xlu0 13
      %392 = vperm.xlu0 %391, %v279
      %v393 = vpop.permute.xlu0 %392
      %v395 = vsel %vm390, %v393, %v389
      %s396 = scalar_lea.vmem [#allocation7], 8
      %vm397 = vcmask 125952
      %398 = vst.msk [vmem:[%s396] sm:$0xf] %vm397, %v395
    $region69: #{tpu_custom_call.1} parent=1 // pred_fallthru
      _
    %s399 = sadd.s32 %s34, 3
    %s400 = sld [smem:[#allocation3 + %s399]]
    %s401 = scalar_lea.vmem [#allocation4], 12
    %v402 = vld [vmem:[%s401] sm:$0xf]
    %p403 = scmp.eq.s32.totalorder %s400, 0
    // Predicated region
    $region70: #{tpu_custom_call.1} parent=1 // pred_check
      %p404 = pneg %p403
    $region71: #{tpu_custom_call.1} parent=1 // pred_check_branch
      %406 = sbr.rel (%p404) target = $region73
    $region72: #{tpu_custom_call.1} parent=1 // pred_region
      %s407 = scalar_lea.vmem [#allocation7], 12
      %vm408 = vcmask 125952
      %409 = vst.msk [vmem:[%s407] sm:$0xf] %vm408, %v402
    $region73: #{tpu_custom_call.1} parent=1 // pred_fallthru
      _
    %p410 = scmp.eq.s32.totalorder %s400, 1
    // Predicated region
    $region74: #{tpu_custom_call.1} parent=1 // pred_check
      %p411 = pneg %p410
    $region75: #{tpu_custom_call.1} parent=1 // pred_check_branch
      %413 = sbr.rel (%p411) target = $region77
    $region76: #{tpu_custom_call.1} parent=1 // pred_region
      %vm414 = vcmask 1047680
      %415 = vrot.lane.b32.xlu0 %v402, 16
      %v416 = vpop.permute.xlu0 %415
      %v417 = vsel %vm414, %v416, %v402
      %418 = vrot.lane.b32.xlu0 %v417, 16
      %v419 = vpop.permute.xlu0 %418
      %v420 = vsel %vm414, %v419, %v402
      %vm421 = vcmp.eq.s32.totalorder %v36, 0
      %423 = vset.pattern.permute.xlu0 1
      %424 = vperm.xlu0 %423, %v402
      %v425 = vpop.permute.xlu0 %424
      %428 = vrot.lane.b32.xlu0 %v420, 113
      %v429 = vpop.permute.xlu0 %428
      %v431 = vsel %vm421, %v425, %v429
      %s432 = scalar_lea.vmem [#allocation7], 12
      %vm433 = vcmask 125952
      %434 = vst.msk [vmem:[%s432] sm:$0xf] %vm433, %v431
    $region77: #{tpu_custom_call.1} parent=1 // pred_fallthru
      _
    %p435 = scmp.eq.s32.totalorder %s400, 4294967295
    // Predicated region
    $region78: #{tpu_custom_call.1} parent=1 // pred_check
      %p436 = pneg %p435
    $region79: #{tpu_custom_call.1} parent=1 // pred_check_branch
      %438 = sbr.rel (%p436) target = $region81
    $region80: #{tpu_custom_call.1} parent=1 // pred_region
      %vm439 = vcmask 1047680
      %440 = vrot.lane.b32.xlu0 %v402, 16
      %v441 = vpop.permute.xlu0 %440
      %v442 = vsel %vm439, %v441, %v402
      %443 = vrot.lane.b32.xlu0 %v442, 16
      %v444 = vpop.permute.xlu0 %443
      %v445 = vsel %vm439, %v444, %v402
      %vm446 = vcmp.eq.s32.totalorder %v36, 15
      %448 = vset.pattern.permute.xlu0 14
      %449 = vperm.xlu0 %448, %v402
      %v450 = vpop.permute.xlu0 %449
      %453 = vrot.lane.b32.xlu0 %v445, 127
      %v454 = vpop.permute.xlu0 %453
      %v456 = vsel %vm446, %v450, %v454
      %s457 = scalar_lea.vmem [#allocation7], 12
      %vm458 = vcmask 125952
      %459 = vst.msk [vmem:[%s457] sm:$0xf] %vm458, %v456
    $region81: #{tpu_custom_call.1} parent=1 // pred_fallthru
      _
    %p460 = scmp.eq.s32.totalorder %s400, 2
    // Predicated region
    $region82: #{tpu_custom_call.1} parent=1 // pred_check
      %p461 = pneg %p460
    $region83: #{tpu_custom_call.1} parent=1 // pred_check_branch
      %463 = sbr.rel (%p461) target = $region85
    $region84: #{tpu_custom_call.1} parent=1 // pred_region
      %vm464 = vcmask 1047680
      %465 = vrot.lane.b32.xlu0 %v402, 16
      %v466 = vpop.permute.xlu0 %465
      %v467 = vsel %vm464, %v466, %v402
      %468 = vrot.lane.b32.xlu0 %v467, 16
      %v469 = vpop.permute.xlu0 %468
      %v470 = vsel %vm464, %v469, %v402
      %vm471 = vcmp.eq.s32.totalorder %v36, 0
      %473 = vset.pattern.permute.xlu0 2
      %474 = vperm.xlu0 %473, %v402
      %v475 = vpop.permute.xlu0 %474
      %478 = vrot.lane.b32.xlu0 %v470, 114
      %v479 = vpop.permute.xlu0 %478
      %v481 = vsel %vm471, %v475, %v479
      %vm482 = vcmp.eq.s32.totalorder %v36, 1
      %483 = vset.pattern.permute.xlu0 1
      %484 = vperm.xlu0 %483, %v402
      %v485 = vpop.permute.xlu0 %484
      %v487 = vsel %vm482, %v485, %v481
      %s488 = scalar_lea.vmem [#allocation7], 12
      %vm489 = vcmask 125952
      %490 = vst.msk [vmem:[%s488] sm:$0xf] %vm489, %v487
    $region85: #{tpu_custom_call.1} parent=1 // pred_fallthru
      _
    %p491 = scmp.eq.s32.totalorder %s400, 4294967294
    // Predicated region
    $region86: #{tpu_custom_call.1} parent=1 // pred_check
      %p492 = pneg %p491
    $region87: #{tpu_custom_call.1} parent=1 // pred_check_branch
      %494 = sbr.rel (%p492) target = $region89
    $region88: #{tpu_custom_call.1} parent=1 // pred_region
      %vm495 = vcmask 1047680
      %496 = vrot.lane.b32.xlu0 %v402, 16
      %v497 = vpop.permute.xlu0 %496
      %v498 = vsel %vm495, %v497, %v402
      %499 = vrot.lane.b32.xlu0 %v498, 16
      %v500 = vpop.permute.xlu0 %499
      %v501 = vsel %vm495, %v500, %v402
      %vm502 = vcmp.eq.s32.totalorder %v36, 14
      %504 = vset.pattern.permute.xlu0 14
      %505 = vperm.xlu0 %504, %v402
      %v506 = vpop.permute.xlu0 %505
      %509 = vrot.lane.b32.xlu0 %v501, 126
      %v510 = vpop.permute.xlu0 %509
      %v512 = vsel %vm502, %v506, %v510
      %vm513 = vcmp.eq.s32.totalorder %v36, 15
      %514 = vset.pattern.permute.xlu0 13
      %515 = vperm.xlu0 %514, %v402
      %v516 = vpop.permute.xlu0 %515
      %v518 = vsel %vm513, %v516, %v512
      %s519 = scalar_lea.vmem [#allocation7], 12
      %vm520 = vcmask 125952
      %521 = vst.msk [vmem:[%s519] sm:$0xf] %vm520, %v518
    $region89: #{tpu_custom_call.1} parent=1 // pred_fallthru
      _
    %s522 = sadd.s32 %s34, 4
    %s523 = sld [smem:[#allocation3 + %s522]]
    %s524 = scalar_lea.vmem [#allocation4], 16
    %v525 = vld [vmem:[%s524] sm:$0xf]
    %p526 = scmp.eq.s32.totalorder %s523, 0
    // Predicated region
    $region90: #{tpu_custom_call.1} parent=1 // pred_check
      %p527 = pneg %p526
    $region91: #{tpu_custom_call.1} parent=1 // pred_check_branch
      %529 = sbr.rel (%p527) target = $region93
    $region92: #{tpu_custom_call.1} parent=1 // pred_region
      %s530 = scalar_lea.vmem [#allocation7], 16
      %vm531 = vcmask 125952
      %532 = vst.msk [vmem:[%s530] sm:$0xf] %vm531, %v525
    $region93: #{tpu_custom_call.1} parent=1 // pred_fallthru
      _
    %p533 = scmp.eq.s32.totalorder %s523, 1
    // Predicated region
    $region94: #{tpu_custom_call.1} parent=1 // pred_check
      %p534 = pneg %p533
    $region95: #{tpu_custom_call.1} parent=1 // pred_check_branch
      %536 = sbr.rel (%p534) target = $region97
    $region96: #{tpu_custom_call.1} parent=1 // pred_region
      %vm537 = vcmask 1047680
      %538 = vrot.lane.b32.xlu0 %v525, 16
      %v539 = vpop.permute.xlu0 %538
      %v540 = vsel %vm537, %v539, %v525
      %541 = vrot.lane.b32.xlu0 %v540, 16
      %v542 = vpop.permute.xlu0 %541
      %v543 = vsel %vm537, %v542, %v525
      %vm544 = vcmp.eq.s32.totalorder %v36, 0
      %546 = vset.pattern.permute.xlu0 1
      %547 = vperm.xlu0 %546, %v525
      %v548 = vpop.permute.xlu0 %547
      %551 = vrot.lane.b32.xlu0 %v543, 113
      %v552 = vpop.permute.xlu0 %551
      %v554 = vsel %vm544, %v548, %v552
      %s555 = scalar_lea.vmem [#allocation7], 16
      %vm556 = vcmask 125952
      %557 = vst.msk [vmem:[%s555] sm:$0xf] %vm556, %v554
    $region97: #{tpu_custom_call.1} parent=1 // pred_fallthru
      _
    %p558 = scmp.eq.s32.totalorder %s523, 4294967295
    // Predicated region
    $region98: #{tpu_custom_call.1} parent=1 // pred_check
      %p559 = pneg %p558
    $region99: #{tpu_custom_call.1} parent=1 // pred_check_branch
      %561 = sbr.rel (%p559) target = $region101
    $region100: #{tpu_custom_call.1} parent=1 // pred_region
      %vm562 = vcmask 1047680
      %563 = vrot.lane.b32.xlu0 %v525, 16
      %v564 = vpop.permute.xlu0 %563
      %v565 = vsel %vm562, %v564, %v525
      %566 = vrot.lane.b32.xlu0 %v565, 16
      %v567 = vpop.permute.xlu0 %566
      %v568 = vsel %vm562, %v567, %v525
      %vm569 = vcmp.eq.s32.totalorder %v36, 15
      %571 = vset.pattern.permute.xlu0 14
      %572 = vperm.xlu0 %571, %v525
      %v573 = vpop.permute.xlu0 %572
      %576 = vrot.lane.b32.xlu0 %v568, 127
      %v577 = vpop.permute.xlu0 %576
      %v579 = vsel %vm569, %v573, %v577
      %s580 = scalar_lea.vmem [#allocation7], 16
      %vm581 = vcmask 125952
      %582 = vst.msk [vmem:[%s580] sm:$0xf] %vm581, %v579
    $region101: #{tpu_custom_call.1} parent=1 // pred_fallthru
      _
    %p583 = scmp.eq.s32.totalorder %s523, 2
    // Predicated region
    $region102: #{tpu_custom_call.1} parent=1 // pred_check
      %p584 = pneg %p583
    $region103: #{tpu_custom_call.1} parent=1 // pred_check_branch
      %586 = sbr.rel (%p584) target = $region105
    $region104: #{tpu_custom_call.1} parent=1 // pred_region
      %vm587 = vcmask 1047680
      %588 = vrot.lane.b32.xlu0 %v525, 16
      %v589 = vpop.permute.xlu0 %588
      %v590 = vsel %vm587, %v589, %v525
      %591 = vrot.lane.b32.xlu0 %v590, 16
      %v592 = vpop.permute.xlu0 %591
      %v593 = vsel %vm587, %v592, %v525
      %vm594 = vcmp.eq.s32.totalorder %v36, 0
      %596 = vset.pattern.permute.xlu0 2
      %597 = vperm.xlu0 %596, %v525
      %v598 = vpop.permute.xlu0 %597
      %601 = vrot.lane.b32.xlu0 %v593, 114
      %v602 = vpop.permute.xlu0 %601
      %v604 = vsel %vm594, %v598, %v602
      %vm605 = vcmp.eq.s32.totalorder %v36, 1
      %606 = vset.pattern.permute.xlu0 1
      %607 = vperm.xlu0 %606, %v525
      %v608 = vpop.permute.xlu0 %607
      %v610 = vsel %vm605, %v608, %v604
      %s611 = scalar_lea.vmem [#allocation7], 16
      %vm612 = vcmask 125952
      %613 = vst.msk [vmem:[%s611] sm:$0xf] %vm612, %v610
    $region105: #{tpu_custom_call.1} parent=1 // pred_fallthru
      _
    %p614 = scmp.eq.s32.totalorder %s523, 4294967294
    // Predicated region
    $region106: #{tpu_custom_call.1} parent=1 // pred_check
      %p615 = pneg %p614
    $region107: #{tpu_custom_call.1} parent=1 // pred_check_branch
      %617 = sbr.rel (%p615) target = $region109
    $region108: #{tpu_custom_call.1} parent=1 // pred_region
      %vm618 = vcmask 1047680
      %619 = vrot.lane.b32.xlu0 %v525, 16
      %v620 = vpop.permute.xlu0 %619
      %v621 = vsel %vm618, %v620, %v525
      %622 = vrot.lane.b32.xlu0 %v621, 16
      %v623 = vpop.permute.xlu0 %622
      %v624 = vsel %vm618, %v623, %v525
      %vm625 = vcmp.eq.s32.totalorder %v36, 14
      %627 = vset.pattern.permute.xlu0 14
      %628 = vperm.xlu0 %627, %v525
      %v629 = vpop.permute.xlu0 %628
      %632 = vrot.lane.b32.xlu0 %v624, 126
      %v633 = vpop.permute.xlu0 %632
      %v635 = vsel %vm625, %v629, %v633
      %vm636 = vcmp.eq.s32.totalorder %v36, 15
      %637 = vset.pattern.permute.xlu0 13
      %638 = vperm.xlu0 %637, %v525
      %v639 = vpop.permute.xlu0 %638
      %v641 = vsel %vm636, %v639, %v635
      %s642 = scalar_lea.vmem [#allocation7], 16
      %vm643 = vcmask 125952
      %644 = vst.msk [vmem:[%s642] sm:$0xf] %vm643, %v641
    $region109: #{tpu_custom_call.1} parent=1 // pred_fallthru
      _
    // Predicated region
    $region110: #{tpu_custom_call.1} parent=1 // pred_check
      _
    $region111: #{tpu_custom_call.1} parent=1 // pred_check_branch
      %646 = sbr.rel (0) target = $region113
    $region112: #{tpu_custom_call.1} parent=1 // pred_region
      %648 = vsyncadd [#allocation6], 0
      %s649 = sshll.u32 [#allocation7], 4
      %s650 = int_to_ptr.vmem [resolvable:$true] %s649
      %s651 = sshll.u32 %s2, 4
      %s652 = int_to_ptr.hbm [resolvable:$true] %s651
      %657 = dma.vmem_to_hbm [thread:$0]  %s650, 320, %s652, [#allocation6], 64, 64, 4
    $region113: #{tpu_custom_call.1} parent=1 // pred_fallthru
      _
    // Predicated region
    $region114: #{tpu_custom_call.1} parent=1 // pred_check
      _
    $region115: #{tpu_custom_call.1} parent=1 // pred_check_branch
      %659 = sbr.rel (0) target = $region117
    $region116: #{tpu_custom_call.1} parent=1 // pred_region
      %661 = dma.done [#allocation6], 320
    $region117: #{tpu_custom_call.1} parent=1 // pred_fallthru
      _
    %662 = vsyncpa [#allocation5], 1
    %663 = vsyncpa [#allocation6], 1

</llo_original>
